<compile_context>
chip_gen: v5e
topology: v5e:2x2
jax: 0.10.0
libtpu: 0.0.40
codegen_flags: <defaults>
</compile_context>

<pallas_src>
import jax
import jax.numpy as jnp
from jax.experimental import pallas as pl
from jax.experimental.pallas import tpu as pltpu

# ---- small, module-consistent dims ----
VOCAB = 50            # len(src_spec.vocab) -- synthetic
VOCAB_PAD = 128       # one-hot lane width (vocab padded to a full lane group)
EMB_DIM = 32          # embedding_dim
ENC_HID = 64          # encoder_hidden_dim (2*ENC_HID == 128 -> one vreg per gate)
DEC_HID = 64          # decoder_hidden_dim
FC_PAD = 128          # fc output padded to a full lane group
SEQ_LEN = 8
BATCH = 2
BATCH_PAD = 8         # batch padded to one full sublane group
DROPOUT_P = 0.5       # identity at inference


def encoder_gru_kernel(srcf_ref, srcb_ref, mf_ref, mb_ref, bi_ref,
                       whh_ref, bhn_ref, wfc_ref, bfc_ref, out_ref, hid_ref):
    T, BP, H = SEQ_LEN, BATCH_PAD, ENC_HID
    G = 2 * H                      # 128: per-gate width = [fwd H | bwd H]
    TB = T * BP

    # --- Fused embedding gather (one-hot matmul) + hoisted input projection ---
    # gi_all[t*BP+b] = emb[src[t,b]] @ W_ih_fwd + emb[src[T-1-t,b]] @ W_ih_bwd
    #                  + b_ih (+ b_hh for r/z gates, folded at pack time).
    vocab_iota = jax.lax.broadcasted_iota(jnp.int32, (TB, VOCAB_PAD), 1)
    oh_f = (srcf_ref[...] == vocab_iota).astype(jnp.float32)          # [TB, Vp]
    oh_b = (srcb_ref[...] == vocab_iota).astype(jnp.float32)          # [TB, Vp]
    gi_all = (jnp.dot(oh_f, mf_ref[...], preferred_element_type=jnp.float32)
              + jnp.dot(oh_b, mb_ref[...], preferred_element_type=jnp.float32)
              + bi_ref[...])                                          # [TB, 3G]

    # Only the recurrent weight / n-gate recurrent bias stay resident across steps.
    whh = whh_ref[...]                                                # [G, 3G] block-diag
    bhn = jnp.broadcast_to(bhn_ref[...], (BP, G))                     # hoisted broadcast

    h = jnp.zeros((BP, G), jnp.float32)                               # [h_fwd | h_bwd]
    hs = []
    # Fused fwd/bwd recurrence, statically unrolled (T = 8): one matmul per step,
    # default (single-pass bf16-input) MXU precision on the serial chain.
    for i in range(T):
        gi = gi_all[i * BP:(i + 1) * BP, :]                           # [BP, 3G], vreg-aligned
        gh = jnp.dot(h, whh, preferred_element_type=jnp.float32)      # [BP, 3G]
        rz = jax.nn.sigmoid(gi[:, 0:2 * G] + gh[:, 0:2 * G])          # merged r|z
        r = rz[:, 0:G]
        z = rz[:, G:2 * G]
        # PyTorch GRU: n = tanh(gi_n + r * (h @ whh_n + bhh_n)) (bhh_n inside r*()).
        n = jnp.tanh(gi[:, 2 * G:3 * G] + r * (gh[:, 2 * G:3 * G] + bhn))
        h = (1.0 - z) * n + z * h
        hs.append(h)

    # Output row t = [fwd state after step t | bwd state after step T-1-t],
    # assembled via lane-mask select (pure VPU), written with ONE dense store.
    is_fwd = jax.lax.broadcasted_iota(jnp.int32, (BP, G), 1) < H
    out_ref[...] = jnp.concatenate(
        [jnp.where(is_fwd, hs[t], hs[T - 1 - t]) for t in range(T)], axis=0)

    # hidden = tanh(fc(cat(h_fwd_final, h_bwd_final))); h is already in that order.
    # wfc/bfc are lane-padded to 128 -> unmasked store; wrapper slices to DEC_HID.
    hid_ref[...] = jnp.tanh(
        jnp.dot(h, wfc_ref[...], preferred_element_type=jnp.float32) + bfc_ref[...])


def init_params(key):
    """PyTorch-style per-direction GRU parameters (stored transposed)."""
    ks = jax.random.split(key, 12)
    u = lambda k, shape, s: jax.random.uniform(k, shape, jnp.float32, -s, s)
    kH = 1.0 / jnp.sqrt(ENC_HID)
    kD = 1.0 / jnp.sqrt(2 * ENC_HID)
    return {
        "embedding": jax.random.normal(ks[0], (VOCAB, EMB_DIM), jnp.float32),
        # GRU forward direction, gates in (r, z, n) order: [E, 3H] / [H, 3H] / [3H]
        "wih_f": u(ks[1], (EMB_DIM, 3 * ENC_HID), kH),
        "whh_f": u(ks[2], (ENC_HID, 3 * ENC_HID), kH),
        "bih_f": u(ks[3], (3 * ENC_HID,), kH),
        "bhh_f": u(ks[4], (3 * ENC_HID,), kH),
        # GRU backward direction
        "wih_b": u(ks[5], (EMB_DIM, 3 * ENC_HID), kH),
        "whh_b": u(ks[6], (ENC_HID, 3 * ENC_HID), kH),
        "bih_b": u(ks[7], (3 * ENC_HID,), kH),
        "bhh_b": u(ks[8], (3 * ENC_HID,), kH),
        # fc: Linear(2H -> D), stored transposed [2H, D]
        "wfc": u(ks[9], (2 * ENC_HID, DEC_HID), kD),
        "bfc": u(ks[10], (1, DEC_HID), kD),
    }


def pack_params(raw):
    """Pack per-direction weights into the fused, lane-aligned kernel layout.

    Gate layout along the 6H axis: (r | z | n), each gate 2H = 128 lanes wide
    with [fwd H | bwd H] sub-columns.  The embedding table is folded into the
    input projection: Mf/Mb are [VOCAB_PAD, 6H] = emb_pad @ W_ih_{fwd,bwd}.
    Recurrent r/z biases are folded into bi; the n-gate recurrent bias stays
    separate (it must be applied inside r*(.)).  whh is block-diagonal [2H, 6H].
    """
    E, H, D = EMB_DIM, ENC_HID, DEC_HID
    G = 2 * H
    hi = jax.lax.Precision.HIGHEST  # one-time pack-time fold, off the hot path

    wf = jnp.zeros((E, 3 * G), jnp.float32)   # fwd input weights (bwd cols zero)
    wb = jnp.zeros((E, 3 * G), jnp.float32)   # bwd input weights (fwd cols zero)
    whh = jnp.zeros((G, 3 * G), jnp.float32)
    bi = jnp.zeros((1, 3 * G), jnp.float32)
    bhn = jnp.zeros((1, G), jnp.float32)
    for g in range(3):
        cf = slice(g * G, g * G + H)          # fwd sub-columns of gate g
        cb = slice(g * G + H, (g + 1) * G)    # bwd sub-columns of gate g
        sg = slice(g * H, (g + 1) * H)        # gate g in the raw [*, 3H] layout
        wf = wf.at[:, cf].set(raw["wih_f"][:, sg])
        wb = wb.at[:, cb].set(raw["wih_b"][:, sg])
        whh = whh.at[0:H, cf].set(raw["whh_f"][:, sg])
        whh = whh.at[H:G, cb].set(raw["whh_b"][:, sg])
        bif, bib = raw["bih_f"][sg], raw["bih_b"][sg]
        if g < 2:  # r, z: recurrent bias can be folded out of the loop
            bif = bif + raw["bhh_f"][sg]
            bib = bib + raw["bhh_b"][sg]
        bi = bi.at[0, cf].set(bif)
        bi = bi.at[0, cb].set(bib)
    bhn = bhn.at[0, 0:H].set(raw["bhh_f"][2 * H:3 * H])
    bhn = bhn.at[0, H:G].set(raw["bhh_b"][2 * H:3 * H])

    emb_pad = jnp.zeros((VOCAB_PAD, E), jnp.float32).at[:VOCAB].set(raw["embedding"])
    mf = jnp.dot(emb_pad, wf, precision=hi)   # [VOCAB_PAD, 6H]
    mb = jnp.dot(emb_pad, wb, precision=hi)   # [VOCAB_PAD, 6H]

    wfc_pad = jnp.zeros((G, FC_PAD), jnp.float32).at[:, :D].set(raw["wfc"])
    bfc_pad = jnp.zeros((1, FC_PAD), jnp.float32).at[0, :D].set(raw["bfc"][0])

    return {"mf": mf, "mb": mb, "bi": bi, "whh": whh, "bhn": bhn,
            "wfc": wfc_pad, "bfc": bfc_pad}


def encoder_forward(src, params):
    T, B = SEQ_LEN, BATCH
    G = 2 * ENC_HID
    # Pad batch to one full sublane group. Padded rows use token 0, start from
    # h = 0, never mix with real rows (batch rows are independent), and are
    # sliced off below.
    src_pad = jnp.zeros((T, BATCH_PAD), jnp.int32).at[:, :B].set(src)
    src_f = src_pad.reshape(T * BATCH_PAD, 1)            # row t*BP+b = src[t, b]
    src_b = src_pad[::-1].reshape(T * BATCH_PAD, 1)      # row t*BP+b = src[T-1-t, b]

    vmem = pl.BlockSpec(memory_space=pltpu.MemorySpace.VMEM)
    out_flat, hid_pad = pl.pallas_call(
        encoder_gru_kernel,
        out_shape=(
            jax.ShapeDtypeStruct((T * BATCH_PAD, G), jnp.float32),
            jax.ShapeDtypeStruct((BATCH_PAD, FC_PAD), jnp.float32),
        ),
        in_specs=[vmem] * 9,
        out_specs=(vmem, vmem),
    )(src_f, src_b, params["mf"], params["mb"], params["bi"],
      params["whh"], params["bhn"], params["wfc"], params["bfc"])

    outputs = out_flat.reshape(T, BATCH_PAD, G)[:, :B, :]   # drop padded batch rows
    hidden = hid_pad[:B, :DEC_HID]                          # drop padded lanes/rows
    return outputs, hidden                                  # [T,B,2H], [B,D]


def encoder_reference(src, raw):
    """Pure-JAX reference matching PyTorch bidirectional GRU + fc + tanh."""
    H = ENC_HID
    hi = jax.lax.Precision.HIGHEST
    emb = raw["embedding"][src]

    def cell(x, h, wih, whh, bih, bhh):
        gi = jnp.dot(x, wih, precision=hi) + bih
        gh = jnp.dot(h, whh, precision=hi) + bhh
        r = jax.nn.sigmoid(gi[:, 0:H] + gh[:, 0:H])
        z = jax.nn.sigmoid(gi[:, H:2 * H] + gh[:, H:2 * H])
        n = jnp.tanh(gi[:, 2 * H:] + r * gh[:, 2 * H:])
        return (1.0 - z) * n + z * h

    hf = jnp.zeros((BATCH, H), jnp.float32)
    hb = jnp.zeros((BATCH, H), jnp.float32)
    outs_f, outs_b = [], [None] * SEQ_LEN
    for t in range(SEQ_LEN):
        hf = cell(emb[t], hf, raw["wih_f"], raw["whh_f"], raw["bih_f"], raw["bhh_f"])
        outs_f.append(hf)
    for t in range(SEQ_LEN - 1, -1, -1):
        hb = cell(emb[t], hb, raw["wih_b"], raw["whh_b"], raw["bih_b"], raw["bhh_b"])
        outs_b[t] = hb
    outputs = jnp.concatenate([jnp.stack(outs_f), jnp.stack(outs_b)], axis=-1)
    hidden = jnp.tanh(jnp.dot(jnp.concatenate([hf, hb], axis=-1), raw["wfc"],
                              precision=hi) + raw["bfc"])
    return outputs, hidden


if __name__ == "__main__":
    key = jax.random.PRNGKey(0)
    pkey, skey = jax.random.split(key)
    raw = init_params(pkey)
    params = pack_params(raw)
    src = jax.random.randint(skey, (SEQ_LEN, BATCH), 0, VOCAB, dtype=jnp.int32)

    outputs, hidden = jax.jit(encoder_forward)(src, params)
    jax.block_until_ready((outputs, hidden))

    assert outputs.shape == (SEQ_LEN, BATCH, 2 * ENC_HID)
    assert hidden.shape == (BATCH, DEC_HID)

    ref_out, ref_hid = jax.jit(encoder_reference)(src, raw)
    jax.block_until_ready((ref_out, ref_hid))
    # Kernel matmuls run at default (bf16-input, f32-accumulate) MXU precision
    # per perf guidance, while the reference runs at HIGHEST, so allow a
    # bf16-scale tolerance (outputs are bounded in [-1, 1]; real packing bugs
    # show up as O(0.1-1) errors).
    assert bool(jnp.allclose(outputs, ref_out, rtol=2e-2, atol=2e-2))
    assert bool(jnp.allclose(hidden, ref_hid, rtol=2e-2, atol=2e-2))
    print("KERNEL_OK")
</pallas_src>

<mosaic_0001>
module attributes {stable_mosaic.version = 11 : i64} {
  func.func @encoder_gru_kernel(%arg0: memref<64x1xi32, #tpu.memory_space<vmem>>, %arg1: memref<64x1xi32, #tpu.memory_space<vmem>>, %arg2: memref<128x384xf32, #tpu.memory_space<vmem>>, %arg3: memref<128x384xf32, #tpu.memory_space<vmem>>, %arg4: memref<1x384xf32, #tpu.memory_space<vmem>>, %arg5: memref<128x384xf32, #tpu.memory_space<vmem>>, %arg6: memref<1x128xf32, #tpu.memory_space<vmem>>, %arg7: memref<128x128xf32, #tpu.memory_space<vmem>>, %arg8: memref<1x128xf32, #tpu.memory_space<vmem>>, %arg9: memref<64x128xf32, #tpu.memory_space<vmem>>, %arg10: memref<8x128xf32, #tpu.memory_space<vmem>>) attributes {dimension_semantics = [], scalar_prefetch = 0 : i64, scratch_operands = 0 : i64, tpu.core_type = #tpu.core_type<tc>} {
    %0 = tpu.iota {dimensions = array<i32: 1>} : vector<64x128xi32>
    %c0 = arith.constant 0 : index
    %c0_0 = arith.constant 0 : index
    %1 = vector.load %arg0[%c0, %c0_0] : memref<64x1xi32, #tpu.memory_space<vmem>>, vector<64x1xi32>
    %2 = vector.broadcast %1 : vector<64x1xi32> to vector<64x128xi32>
    %3 = arith.cmpi eq, %2, %0 : vector<64x128xi32>
    %4 = arith.extui %3 : vector<64x128xi1> to vector<64x128xi32>
    %5 = arith.sitofp %4 : vector<64x128xi32> to vector<64x128xf32>
    %c0_1 = arith.constant 0 : index
    %c0_2 = arith.constant 0 : index
    %6 = vector.load %arg1[%c0_1, %c0_2] : memref<64x1xi32, #tpu.memory_space<vmem>>, vector<64x1xi32>
    %7 = vector.broadcast %6 : vector<64x1xi32> to vector<64x128xi32>
    %8 = arith.cmpi eq, %7, %0 : vector<64x128xi32>
    %9 = arith.extui %8 : vector<64x128xi1> to vector<64x128xi32>
    %10 = arith.sitofp %9 : vector<64x128xi32> to vector<64x128xf32>
    %c0_3 = arith.constant 0 : index
    %c0_4 = arith.constant 0 : index
    %11 = vector.load %arg2[%c0_3, %c0_4] : memref<128x384xf32, #tpu.memory_space<vmem>>, vector<128x384xf32>
    %cst = arith.constant dense<0.000000e+00> : vector<64x384xf32>
    %12 = tpu.matmul %5, %11, %cst {dimension_numbers = #tpu.dot_dimension_numbers<[1], [0], [0], [1], [0, 0, 1, 1], [], []>} : vector<64x128xf32>, vector<128x384xf32>, vector<64x384xf32> -> vector<64x384xf32>
    %c0_5 = arith.constant 0 : index
    %c0_6 = arith.constant 0 : index
    %13 = vector.load %arg3[%c0_5, %c0_6] : memref<128x384xf32, #tpu.memory_space<vmem>>, vector<128x384xf32>
    %cst_7 = arith.constant dense<0.000000e+00> : vector<64x384xf32>
    %14 = tpu.matmul %10, %13, %cst_7 {dimension_numbers = #tpu.dot_dimension_numbers<[1], [0], [0], [1], [0, 0, 1, 1], [], []>} : vector<64x128xf32>, vector<128x384xf32>, vector<64x384xf32> -> vector<64x384xf32>
    %15 = arith.addf %12, %14 : vector<64x384xf32>
    %c0_8 = arith.constant 0 : index
    %c0_9 = arith.constant 0 : index
    %16 = vector.load %arg4[%c0_8, %c0_9] : memref<1x384xf32, #tpu.memory_space<vmem>>, vector<1x384xf32>
    %17 = vector.broadcast %16 : vector<1x384xf32> to vector<64x384xf32>
    %18 = arith.addf %15, %17 : vector<64x384xf32>
    %c0_10 = arith.constant 0 : index
    %c0_11 = arith.constant 0 : index
    %19 = vector.load %arg5[%c0_10, %c0_11] : memref<128x384xf32, #tpu.memory_space<vmem>>, vector<128x384xf32>
    %c0_12 = arith.constant 0 : index
    %c0_13 = arith.constant 0 : index
    %20 = vector.load %arg6[%c0_12, %c0_13] : memref<1x128xf32, #tpu.memory_space<vmem>>, vector<1x128xf32>
    %21 = vector.shape_cast %20 : vector<1x128xf32> to vector<1x128xf32>
    %22 = vector.broadcast %21 : vector<1x128xf32> to vector<8x128xf32>
    %cst_14 = arith.constant 0.000000e+00 : f32
    %23 = vector.broadcast %cst_14 : f32 to vector<8x128xf32>
    %24 = vector.extract_strided_slice %18 {offsets = [0, 0], sizes = [8, 384], strides = [1, 1]} : vector<64x384xf32> to vector<8x384xf32>
    %cst_15 = arith.constant dense<0.000000e+00> : vector<8x384xf32>
    %25 = tpu.matmul %23, %19, %cst_15 {dimension_numbers = #tpu.dot_dimension_numbers<[1], [0], [0], [1], [0, 0, 1, 1], [], []>} : vector<8x128xf32>, vector<128x384xf32>, vector<8x384xf32> -> vector<8x384xf32>
    %26 = vector.extract_strided_slice %24 {offsets = [0, 0], sizes = [8, 256], strides = [1, 1]} : vector<8x384xf32> to vector<8x256xf32>
    %27 = vector.extract_strided_slice %25 {offsets = [0, 0], sizes = [8, 256], strides = [1, 1]} : vector<8x384xf32> to vector<8x256xf32>
    %28 = arith.addf %26, %27 : vector<8x256xf32>
    %29 = arith.negf %28 : vector<8x256xf32>
    %30 = math.exp %29 : vector<8x256xf32>
    %cst_16 = arith.constant 1.000000e+00 : f32
    %31 = vector.broadcast %cst_16 : f32 to vector<8x256xf32>
    %32 = arith.addf %31, %30 : vector<8x256xf32>
    %33 = arith.divf %31, %32 : vector<8x256xf32>
    %34 = vector.extract_strided_slice %33 {offsets = [0, 0], sizes = [8, 128], strides = [1, 1]} : vector<8x256xf32> to vector<8x128xf32>
    %35 = vector.extract_strided_slice %33 {offsets = [0, 128], sizes = [8, 128], strides = [1, 1]} : vector<8x256xf32> to vector<8x128xf32>
    %36 = vector.extract_strided_slice %24 {offsets = [0, 256], sizes = [8, 128], strides = [1, 1]} : vector<8x384xf32> to vector<8x128xf32>
    %37 = vector.extract_strided_slice %25 {offsets = [0, 256], sizes = [8, 128], strides = [1, 1]} : vector<8x384xf32> to vector<8x128xf32>
    %38 = arith.addf %37, %22 : vector<8x128xf32>
    %39 = arith.mulf %34, %38 : vector<8x128xf32>
    %40 = arith.addf %36, %39 : vector<8x128xf32>
    %41 = math.tanh %40 : vector<8x128xf32>
    %cst_17 = arith.constant 1.000000e+00 : f32
    %42 = vector.broadcast %cst_17 : f32 to vector<8x128xf32>
    %43 = arith.subf %42, %35 : vector<8x128xf32>
    %44 = arith.mulf %43, %41 : vector<8x128xf32>
    %45 = arith.mulf %35, %23 : vector<8x128xf32>
    %46 = arith.addf %44, %45 : vector<8x128xf32>
    %47 = vector.extract_strided_slice %18 {offsets = [8, 0], sizes = [8, 384], strides = [1, 1]} : vector<64x384xf32> to vector<8x384xf32>
    %cst_18 = arith.constant dense<0.000000e+00> : vector<8x384xf32>
    %48 = tpu.matmul %46, %19, %cst_18 {dimension_numbers = #tpu.dot_dimension_numbers<[1], [0], [0], [1], [0, 0, 1, 1], [], []>} : vector<8x128xf32>, vector<128x384xf32>, vector<8x384xf32> -> vector<8x384xf32>
    %49 = vector.extract_strided_slice %47 {offsets = [0, 0], sizes = [8, 256], strides = [1, 1]} : vector<8x384xf32> to vector<8x256xf32>
    %50 = vector.extract_strided_slice %48 {offsets = [0, 0], sizes = [8, 256], strides = [1, 1]} : vector<8x384xf32> to vector<8x256xf32>
    %51 = arith.addf %49, %50 : vector<8x256xf32>
    %52 = arith.negf %51 : vector<8x256xf32>
    %53 = math.exp %52 : vector<8x256xf32>
    %cst_19 = arith.constant 1.000000e+00 : f32
    %54 = vector.broadcast %cst_19 : f32 to vector<8x256xf32>
    %55 = arith.addf %54, %53 : vector<8x256xf32>
    %56 = arith.divf %54, %55 : vector<8x256xf32>
    %57 = vector.extract_strided_slice %56 {offsets = [0, 0], sizes = [8, 128], strides = [1, 1]} : vector<8x256xf32> to vector<8x128xf32>
    %58 = vector.extract_strided_slice %56 {offsets = [0, 128], sizes = [8, 128], strides = [1, 1]} : vector<8x256xf32> to vector<8x128xf32>
    %59 = vector.extract_strided_slice %47 {offsets = [0, 256], sizes = [8, 128], strides = [1, 1]} : vector<8x384xf32> to vector<8x128xf32>
    %60 = vector.extract_strided_slice %48 {offsets = [0, 256], sizes = [8, 128], strides = [1, 1]} : vector<8x384xf32> to vector<8x128xf32>
    %61 = arith.addf %60, %22 : vector<8x128xf32>
    %62 = arith.mulf %57, %61 : vector<8x128xf32>
    %63 = arith.addf %59, %62 : vector<8x128xf32>
    %64 = math.tanh %63 : vector<8x128xf32>
    %cst_20 = arith.constant 1.000000e+00 : f32
    %65 = vector.broadcast %cst_20 : f32 to vector<8x128xf32>
    %66 = arith.subf %65, %58 : vector<8x128xf32>
    %67 = arith.mulf %66, %64 : vector<8x128xf32>
    %68 = arith.mulf %58, %46 : vector<8x128xf32>
    %69 = arith.addf %67, %68 : vector<8x128xf32>
    %70 = vector.extract_strided_slice %18 {offsets = [16, 0], sizes = [8, 384], strides = [1, 1]} : vector<64x384xf32> to vector<8x384xf32>
    %cst_21 = arith.constant dense<0.000000e+00> : vector<8x384xf32>
    %71 = tpu.matmul %69, %19, %cst_21 {dimension_numbers = #tpu.dot_dimension_numbers<[1], [0], [0], [1], [0, 0, 1, 1], [], []>} : vector<8x128xf32>, vector<128x384xf32>, vector<8x384xf32> -> vector<8x384xf32>
    %72 = vector.extract_strided_slice %70 {offsets = [0, 0], sizes = [8, 256], strides = [1, 1]} : vector<8x384xf32> to vector<8x256xf32>
    %73 = vector.extract_strided_slice %71 {offsets = [0, 0], sizes = [8, 256], strides = [1, 1]} : vector<8x384xf32> to vector<8x256xf32>
    %74 = arith.addf %72, %73 : vector<8x256xf32>
    %75 = arith.negf %74 : vector<8x256xf32>
    %76 = math.exp %75 : vector<8x256xf32>
    %cst_22 = arith.constant 1.000000e+00 : f32
    %77 = vector.broadcast %cst_22 : f32 to vector<8x256xf32>
    %78 = arith.addf %77, %76 : vector<8x256xf32>
    %79 = arith.divf %77, %78 : vector<8x256xf32>
    %80 = vector.extract_strided_slice %79 {offsets = [0, 0], sizes = [8, 128], strides = [1, 1]} : vector<8x256xf32> to vector<8x128xf32>
    %81 = vector.extract_strided_slice %79 {offsets = [0, 128], sizes = [8, 128], strides = [1, 1]} : vector<8x256xf32> to vector<8x128xf32>
    %82 = vector.extract_strided_slice %70 {offsets = [0, 256], sizes = [8, 128], strides = [1, 1]} : vector<8x384xf32> to vector<8x128xf32>
    %83 = vector.extract_strided_slice %71 {offsets = [0, 256], sizes = [8, 128], strides = [1, 1]} : vector<8x384xf32> to vector<8x128xf32>
    %84 = arith.addf %83, %22 : vector<8x128xf32>
    %85 = arith.mulf %80, %84 : vector<8x128xf32>
    %86 = arith.addf %82, %85 : vector<8x128xf32>
    %87 = math.tanh %86 : vector<8x128xf32>
    %cst_23 = arith.constant 1.000000e+00 : f32
    %88 = vector.broadcast %cst_23 : f32 to vector<8x128xf32>
    %89 = arith.subf %88, %81 : vector<8x128xf32>
    %90 = arith.mulf %89, %87 : vector<8x128xf32>
    %91 = arith.mulf %81, %69 : vector<8x128xf32>
    %92 = arith.addf %90, %91 : vector<8x128xf32>
    %93 = vector.extract_strided_slice %18 {offsets = [24, 0], sizes = [8, 384], strides = [1, 1]} : vector<64x384xf32> to vector<8x384xf32>
    %cst_24 = arith.constant dense<0.000000e+00> : vector<8x384xf32>
    %94 = tpu.matmul %92, %19, %cst_24 {dimension_numbers = #tpu.dot_dimension_numbers<[1], [0], [0], [1], [0, 0, 1, 1], [], []>} : vector<8x128xf32>, vector<128x384xf32>, vector<8x384xf32> -> vector<8x384xf32>
    %95 = vector.extract_strided_slice %93 {offsets = [0, 0], sizes = [8, 256], strides = [1, 1]} : vector<8x384xf32> to vector<8x256xf32>
    %96 = vector.extract_strided_slice %94 {offsets = [0, 0], sizes = [8, 256], strides = [1, 1]} : vector<8x384xf32> to vector<8x256xf32>
    %97 = arith.addf %95, %96 : vector<8x256xf32>
    %98 = arith.negf %97 : vector<8x256xf32>
    %99 = math.exp %98 : vector<8x256xf32>
    %cst_25 = arith.constant 1.000000e+00 : f32
    %100 = vector.broadcast %cst_25 : f32 to vector<8x256xf32>
    %101 = arith.addf %100, %99 : vector<8x256xf32>
    %102 = arith.divf %100, %101 : vector<8x256xf32>
    %103 = vector.extract_strided_slice %102 {offsets = [0, 0], sizes = [8, 128], strides = [1, 1]} : vector<8x256xf32> to vector<8x128xf32>
    %104 = vector.extract_strided_slice %102 {offsets = [0, 128], sizes = [8, 128], strides = [1, 1]} : vector<8x256xf32> to vector<8x128xf32>
    %105 = vector.extract_strided_slice %93 {offsets = [0, 256], sizes = [8, 128], strides = [1, 1]} : vector<8x384xf32> to vector<8x128xf32>
    %106 = vector.extract_strided_slice %94 {offsets = [0, 256], sizes = [8, 128], strides = [1, 1]} : vector<8x384xf32> to vector<8x128xf32>
    %107 = arith.addf %106, %22 : vector<8x128xf32>
    %108 = arith.mulf %103, %107 : vector<8x128xf32>
    %109 = arith.addf %105, %108 : vector<8x128xf32>
    %110 = math.tanh %109 : vector<8x128xf32>
    %cst_26 = arith.constant 1.000000e+00 : f32
    %111 = vector.broadcast %cst_26 : f32 to vector<8x128xf32>
    %112 = arith.subf %111, %104 : vector<8x128xf32>
    %113 = arith.mulf %112, %110 : vector<8x128xf32>
    %114 = arith.mulf %104, %92 : vector<8x128xf32>
    %115 = arith.addf %113, %114 : vector<8x128xf32>
    %116 = vector.extract_strided_slice %18 {offsets = [32, 0], sizes = [8, 384], strides = [1, 1]} : vector<64x384xf32> to vector<8x384xf32>
    %cst_27 = arith.constant dense<0.000000e+00> : vector<8x384xf32>
    %117 = tpu.matmul %115, %19, %cst_27 {dimension_numbers = #tpu.dot_dimension_numbers<[1], [0], [0], [1], [0, 0, 1, 1], [], []>} : vector<8x128xf32>, vector<128x384xf32>, vector<8x384xf32> -> vector<8x384xf32>
    %118 = vector.extract_strided_slice %116 {offsets = [0, 0], sizes = [8, 256], strides = [1, 1]} : vector<8x384xf32> to vector<8x256xf32>
    %119 = vector.extract_strided_slice %117 {offsets = [0, 0], sizes = [8, 256], strides = [1, 1]} : vector<8x384xf32> to vector<8x256xf32>
    %120 = arith.addf %118, %119 : vector<8x256xf32>
    %121 = arith.negf %120 : vector<8x256xf32>
    %122 = math.exp %121 : vector<8x256xf32>
    %cst_28 = arith.constant 1.000000e+00 : f32
    %123 = vector.broadcast %cst_28 : f32 to vector<8x256xf32>
    %124 = arith.addf %123, %122 : vector<8x256xf32>
    %125 = arith.divf %123, %124 : vector<8x256xf32>
    %126 = vector.extract_strided_slice %125 {offsets = [0, 0], sizes = [8, 128], strides = [1, 1]} : vector<8x256xf32> to vector<8x128xf32>
    %127 = vector.extract_strided_slice %125 {offsets = [0, 128], sizes = [8, 128], strides = [1, 1]} : vector<8x256xf32> to vector<8x128xf32>
    %128 = vector.extract_strided_slice %116 {offsets = [0, 256], sizes = [8, 128], strides = [1, 1]} : vector<8x384xf32> to vector<8x128xf32>
    %129 = vector.extract_strided_slice %117 {offsets = [0, 256], sizes = [8, 128], strides = [1, 1]} : vector<8x384xf32> to vector<8x128xf32>
    %130 = arith.addf %129, %22 : vector<8x128xf32>
    %131 = arith.mulf %126, %130 : vector<8x128xf32>
    %132 = arith.addf %128, %131 : vector<8x128xf32>
    %133 = math.tanh %132 : vector<8x128xf32>
    %cst_29 = arith.constant 1.000000e+00 : f32
    %134 = vector.broadcast %cst_29 : f32 to vector<8x128xf32>
    %135 = arith.subf %134, %127 : vector<8x128xf32>
    %136 = arith.mulf %135, %133 : vector<8x128xf32>
    %137 = arith.mulf %127, %115 : vector<8x128xf32>
    %138 = arith.addf %136, %137 : vector<8x128xf32>
    %139 = vector.extract_strided_slice %18 {offsets = [40, 0], sizes = [8, 384], strides = [1, 1]} : vector<64x384xf32> to vector<8x384xf32>
    %cst_30 = arith.constant dense<0.000000e+00> : vector<8x384xf32>
    %140 = tpu.matmul %138, %19, %cst_30 {dimension_numbers = #tpu.dot_dimension_numbers<[1], [0], [0], [1], [0, 0, 1, 1], [], []>} : vector<8x128xf32>, vector<128x384xf32>, vector<8x384xf32> -> vector<8x384xf32>
    %141 = vector.extract_strided_slice %139 {offsets = [0, 0], sizes = [8, 256], strides = [1, 1]} : vector<8x384xf32> to vector<8x256xf32>
    %142 = vector.extract_strided_slice %140 {offsets = [0, 0], sizes = [8, 256], strides = [1, 1]} : vector<8x384xf32> to vector<8x256xf32>
    %143 = arith.addf %141, %142 : vector<8x256xf32>
    %144 = arith.negf %143 : vector<8x256xf32>
    %145 = math.exp %144 : vector<8x256xf32>
    %cst_31 = arith.constant 1.000000e+00 : f32
    %146 = vector.broadcast %cst_31 : f32 to vector<8x256xf32>
    %147 = arith.addf %146, %145 : vector<8x256xf32>
    %148 = arith.divf %146, %147 : vector<8x256xf32>
    %149 = vector.extract_strided_slice %148 {offsets = [0, 0], sizes = [8, 128], strides = [1, 1]} : vector<8x256xf32> to vector<8x128xf32>
    %150 = vector.extract_strided_slice %148 {offsets = [0, 128], sizes = [8, 128], strides = [1, 1]} : vector<8x256xf32> to vector<8x128xf32>
    %151 = vector.extract_strided_slice %139 {offsets = [0, 256], sizes = [8, 128], strides = [1, 1]} : vector<8x384xf32> to vector<8x128xf32>
    %152 = vector.extract_strided_slice %140 {offsets = [0, 256], sizes = [8, 128], strides = [1, 1]} : vector<8x384xf32> to vector<8x128xf32>
    %153 = arith.addf %152, %22 : vector<8x128xf32>
    %154 = arith.mulf %149, %153 : vector<8x128xf32>
    %155 = arith.addf %151, %154 : vector<8x128xf32>
    %156 = math.tanh %155 : vector<8x128xf32>
    %cst_32 = arith.constant 1.000000e+00 : f32
    %157 = vector.broadcast %cst_32 : f32 to vector<8x128xf32>
    %158 = arith.subf %157, %150 : vector<8x128xf32>
    %159 = arith.mulf %158, %156 : vector<8x128xf32>
    %160 = arith.mulf %150, %138 : vector<8x128xf32>
    %161 = arith.addf %159, %160 : vector<8x128xf32>
    %162 = vector.extract_strided_slice %18 {offsets = [48, 0], sizes = [8, 384], strides = [1, 1]} : vector<64x384xf32> to vector<8x384xf32>
    %cst_33 = arith.constant dense<0.000000e+00> : vector<8x384xf32>
    %163 = tpu.matmul %161, %19, %cst_33 {dimension_numbers = #tpu.dot_dimension_numbers<[1], [0], [0], [1], [0, 0, 1, 1], [], []>} : vector<8x128xf32>, vector<128x384xf32>, vector<8x384xf32> -> vector<8x384xf32>
    %164 = vector.extract_strided_slice %162 {offsets = [0, 0], sizes = [8, 256], strides = [1, 1]} : vector<8x384xf32> to vector<8x256xf32>
    %165 = vector.extract_strided_slice %163 {offsets = [0, 0], sizes = [8, 256], strides = [1, 1]} : vector<8x384xf32> to vector<8x256xf32>
    %166 = arith.addf %164, %165 : vector<8x256xf32>
    %167 = arith.negf %166 : vector<8x256xf32>
    %168 = math.exp %167 : vector<8x256xf32>
    %cst_34 = arith.constant 1.000000e+00 : f32
    %169 = vector.broadcast %cst_34 : f32 to vector<8x256xf32>
    %170 = arith.addf %169, %168 : vector<8x256xf32>
    %171 = arith.divf %169, %170 : vector<8x256xf32>
    %172 = vector.extract_strided_slice %171 {offsets = [0, 0], sizes = [8, 128], strides = [1, 1]} : vector<8x256xf32> to vector<8x128xf32>
    %173 = vector.extract_strided_slice %171 {offsets = [0, 128], sizes = [8, 128], strides = [1, 1]} : vector<8x256xf32> to vector<8x128xf32>
    %174 = vector.extract_strided_slice %162 {offsets = [0, 256], sizes = [8, 128], strides = [1, 1]} : vector<8x384xf32> to vector<8x128xf32>
    %175 = vector.extract_strided_slice %163 {offsets = [0, 256], sizes = [8, 128], strides = [1, 1]} : vector<8x384xf32> to vector<8x128xf32>
    %176 = arith.addf %175, %22 : vector<8x128xf32>
    %177 = arith.mulf %172, %176 : vector<8x128xf32>
    %178 = arith.addf %174, %177 : vector<8x128xf32>
    %179 = math.tanh %178 : vector<8x128xf32>
    %cst_35 = arith.constant 1.000000e+00 : f32
    %180 = vector.broadcast %cst_35 : f32 to vector<8x128xf32>
    %181 = arith.subf %180, %173 : vector<8x128xf32>
    %182 = arith.mulf %181, %179 : vector<8x128xf32>
    %183 = arith.mulf %173, %161 : vector<8x128xf32>
    %184 = arith.addf %182, %183 : vector<8x128xf32>
    %185 = vector.extract_strided_slice %18 {offsets = [56, 0], sizes = [8, 384], strides = [1, 1]} : vector<64x384xf32> to vector<8x384xf32>
    %cst_36 = arith.constant dense<0.000000e+00> : vector<8x384xf32>
    %186 = tpu.matmul %184, %19, %cst_36 {dimension_numbers = #tpu.dot_dimension_numbers<[1], [0], [0], [1], [0, 0, 1, 1], [], []>} : vector<8x128xf32>, vector<128x384xf32>, vector<8x384xf32> -> vector<8x384xf32>
    %187 = vector.extract_strided_slice %185 {offsets = [0, 0], sizes = [8, 256], strides = [1, 1]} : vector<8x384xf32> to vector<8x256xf32>
    %188 = vector.extract_strided_slice %186 {offsets = [0, 0], sizes = [8, 256], strides = [1, 1]} : vector<8x384xf32> to vector<8x256xf32>
    %189 = arith.addf %187, %188 : vector<8x256xf32>
    %190 = arith.negf %189 : vector<8x256xf32>
    %191 = math.exp %190 : vector<8x256xf32>
    %cst_37 = arith.constant 1.000000e+00 : f32
    %192 = vector.broadcast %cst_37 : f32 to vector<8x256xf32>
    %193 = arith.addf %192, %191 : vector<8x256xf32>
    %194 = arith.divf %192, %193 : vector<8x256xf32>
    %195 = vector.extract_strided_slice %194 {offsets = [0, 0], sizes = [8, 128], strides = [1, 1]} : vector<8x256xf32> to vector<8x128xf32>
    %196 = vector.extract_strided_slice %194 {offsets = [0, 128], sizes = [8, 128], strides = [1, 1]} : vector<8x256xf32> to vector<8x128xf32>
    %197 = vector.extract_strided_slice %185 {offsets = [0, 256], sizes = [8, 128], strides = [1, 1]} : vector<8x384xf32> to vector<8x128xf32>
    %198 = vector.extract_strided_slice %186 {offsets = [0, 256], sizes = [8, 128], strides = [1, 1]} : vector<8x384xf32> to vector<8x128xf32>
    %199 = arith.addf %198, %22 : vector<8x128xf32>
    %200 = arith.mulf %195, %199 : vector<8x128xf32>
    %201 = arith.addf %197, %200 : vector<8x128xf32>
    %202 = math.tanh %201 : vector<8x128xf32>
    %cst_38 = arith.constant 1.000000e+00 : f32
    %203 = vector.broadcast %cst_38 : f32 to vector<8x128xf32>
    %204 = arith.subf %203, %196 : vector<8x128xf32>
    %205 = arith.mulf %204, %202 : vector<8x128xf32>
    %206 = arith.mulf %196, %184 : vector<8x128xf32>
    %207 = arith.addf %205, %206 : vector<8x128xf32>
    %208 = tpu.iota {dimensions = array<i32: 1>} : vector<8x128xi32>
    %c64_i32 = arith.constant 64 : i32
    %209 = vector.broadcast %c64_i32 : i32 to vector<8x128xi32>
    %210 = arith.cmpi slt, %208, %209 : vector<8x128xi32>
    %211 = arith.select %210, %46, %207 : vector<8x128xi1>, vector<8x128xf32>
    %212 = arith.select %210, %69, %184 : vector<8x128xi1>, vector<8x128xf32>
    %213 = arith.select %210, %92, %161 : vector<8x128xi1>, vector<8x128xf32>
    %214 = arith.select %210, %115, %138 : vector<8x128xi1>, vector<8x128xf32>
    %215 = arith.select %210, %138, %115 : vector<8x128xi1>, vector<8x128xf32>
    %216 = arith.select %210, %161, %92 : vector<8x128xi1>, vector<8x128xf32>
    %217 = arith.select %210, %184, %69 : vector<8x128xi1>, vector<8x128xf32>
    %218 = arith.select %210, %207, %46 : vector<8x128xi1>, vector<8x128xf32>
    %219 = tpu.concatenate %211, %212, %213, %214, %215, %216, %217, %218 in 0 : vector<8x128xf32>, vector<8x128xf32>, vector<8x128xf32>, vector<8x128xf32>, vector<8x128xf32>, vector<8x128xf32>, vector<8x128xf32>, vector<8x128xf32> -> vector<64x128xf32>
    %c0_39 = arith.constant 0 : index
    %c0_40 = arith.constant 0 : index
    %220 = vector.load %arg9[%c0_39, %c0_40] : memref<64x128xf32, #tpu.memory_space<vmem>>, vector<64x128xf32>
    tpu.vector_store %arg9[%c0_39, %c0_40], %219 {strides = array<i32>} : memref<64x128xf32, #tpu.memory_space<vmem>>, vector<64x128xf32>,
    %c0_41 = arith.constant 0 : index
    %c0_42 = arith.constant 0 : index
    %221 = vector.load %arg7[%c0_41, %c0_42] : memref<128x128xf32, #tpu.memory_space<vmem>>, vector<128x128xf32>
    %cst_43 = arith.constant dense<0.000000e+00> : vector<8x128xf32>
    %222 = tpu.matmul %207, %221, %cst_43 {dimension_numbers = #tpu.dot_dimension_numbers<[1], [0], [0], [1], [0, 0, 1, 1], [], []>} : vector<8x128xf32>, vector<128x128xf32>, vector<8x128xf32> -> vector<8x128xf32>
    %c0_44 = arith.constant 0 : index
    %c0_45 = arith.constant 0 : index
    %223 = vector.load %arg8[%c0_44, %c0_45] : memref<1x128xf32, #tpu.memory_space<vmem>>, vector<1x128xf32>
    %224 = vector.broadcast %223 : vector<1x128xf32> to vector<8x128xf32>
    %225 = arith.addf %222, %224 : vector<8x128xf32>
    %226 = math.tanh %225 : vector<8x128xf32>
    %c0_46 = arith.constant 0 : index
    %c0_47 = arith.constant 0 : index
    %227 = vector.load %arg10[%c0_46, %c0_47] : memref<8x128xf32, #tpu.memory_space<vmem>>, vector<8x128xf32>
    tpu.vector_store %arg10[%c0_46, %c0_47], %226 {strides = array<i32>} : memref<8x128xf32, #tpu.memory_space<vmem>>, vector<8x128xf32>,
    return
  }
}

</mosaic_0001>

<llo_original>
// kernel: encoder_forward.1
$region0: #{encoder_forward.1}
  #allocation0 [shape = 'u32[]', space=smem, size = 0x4, offset = 0x4, fixed_abs, tag = 'smem constant byte address 0x4 - core index']
  #allocation1 [shape = 'u32[72,128]{1,0:T(1,128)}', space=vmem, size = 0x9000, scoped, tag = 'internal scratch']
  %s0 = inlined_call_operand.vmem [shape: s32[64,1], index: 0, kind: input, shape index: {}]
  %s1 = inlined_call_operand.vmem [shape: s32[64,1], index: 1, kind: input, shape index: {}]
  %s2 = inlined_call_operand.hbm [shape: f32[128,384], index: 2, kind: input, shape index: {}]
  %s3 = inlined_call_operand.hbm [shape: f32[128,384], index: 3, kind: input, shape index: {}]
  %s4 = inlined_call_operand.vmem [shape: f32[1,384], index: 4, kind: input, shape index: {}]
  %s5 = inlined_call_operand.hbm [shape: f32[128,384], index: 5, kind: input, shape index: {}]
  %s6 = inlined_call_operand.vmem [shape: f32[1,128], index: 6, kind: input, shape index: {}]
  %s7 = inlined_call_operand.vmem [shape: f32[128,128], index: 7, kind: input, shape index: {}]
  %s8 = inlined_call_operand.vmem [shape: f32[1,128], index: 8, kind: input, shape index: {}]
  %s9 = inlined_call_operand.vmem [shape: f32[64,128], index: 9, kind: output, shape index: {0}]
  %s10 = inlined_call_operand.vmem [shape: f32[8,128], index: 10, kind: output, shape index: {1}]
  %11 = xla_tuple %s9, %s10
  %s12 = sld [smem:[#allocation0]]
  $region66: #{encoder_forward.1} parent=0
    _
  %s14 = ssub.s32 1, %s12
  %s15 = scalar_select 0, %s14, %s12
  $region1: #{encoder_forward.1} parent=0
    #allocation2 [shape = 'u8[196608]{0}', space=vmem, size = 0x30000, scoped, tag = 'input window, operand 2, single buffered']
    #allocation3 [shape = 's32[1]{0}', space=sflag, size = 0x4, scoped, tag = 'scoped memory for encoder_forward.1']
    #allocation4 [shape = 'u8[196608]{0}', space=vmem, size = 0x30000, scoped, tag = 'input window, operand 3, single buffered']
    #allocation5 [shape = 's32[1]{0}', space=sflag, size = 0x4, scoped, tag = 'scoped memory for encoder_forward.1']
    #allocation6 [shape = 'u8[196608]{0}', space=vmem, size = 0x30000, scoped, tag = 'input window, operand 5, single buffered']
    %16 = vsyncpa [#allocation3], 0
    %17 = vsyncpa [#allocation5], 0
    // Predicated region
    $region2: #{encoder_forward.1} parent=1 // pred_check
      _
    $region3: #{encoder_forward.1} parent=1 // pred_check_branch
      %19 = sbr.rel (0) target = $region5
    $region4: #{encoder_forward.1} parent=1 // pred_region
      _
    $region5: #{encoder_forward.1} parent=1 // pred_fallthru
      _
    // Predicated region
    $region6: #{encoder_forward.1} parent=1 // pred_check
      _
    $region7: #{encoder_forward.1} parent=1 // pred_check_branch
      %21 = sbr.rel (0) target = $region9
    $region8: #{encoder_forward.1} parent=1 // pred_region
      _
    $region9: #{encoder_forward.1} parent=1 // pred_fallthru
      _
    // Predicated region
    $region10: #{encoder_forward.1} parent=1 // pred_check
      _
    $region11: #{encoder_forward.1} parent=1 // pred_check_branch
      %23 = sbr.rel (0) target = $region13
    $region12: #{encoder_forward.1} parent=1 // pred_region
      %25 = vsyncadd [#allocation3], 0
      %s26 = sshll.u32 %s2, 4
      %s27 = int_to_ptr.hbm [resolvable:$true] %s26
      %s28 = sshll.u32 [#allocation2], 4
      %s29 = int_to_ptr.vmem [resolvable:$true] %s28
      %34 = dma.hbm_to_vmem [thread:$0]  %s27, 6144, %s29, [#allocation3], 384, 384, 24
    $region13: #{encoder_forward.1} parent=1 // pred_fallthru
      _
    // Predicated region
    $region14: #{encoder_forward.1} parent=1 // pred_check
      _
    $region15: #{encoder_forward.1} parent=1 // pred_check_branch
      %36 = sbr.rel (0) target = $region17
    $region16: #{encoder_forward.1} parent=1 // pred_region
      %38 = vsyncadd [#allocation5], 0
      %s39 = sshll.u32 %s3, 4
      %s40 = int_to_ptr.hbm [resolvable:$true] %s39
      %s41 = sshll.u32 [#allocation4], 4
      %s42 = int_to_ptr.vmem [resolvable:$true] %s41
      %47 = dma.hbm_to_vmem [thread:$0]  %s40, 6144, %s42, [#allocation5], 384, 384, 24
    $region17: #{encoder_forward.1} parent=1 // pred_fallthru
      _
    // Predicated region
    $region18: #{encoder_forward.1} parent=1 // pred_check
      _
    $region19: #{encoder_forward.1} parent=1 // pred_check_branch
      %49 = sbr.rel (0) target = $region21
    $region20: #{encoder_forward.1} parent=1 // pred_region
      _
    $region21: #{encoder_forward.1} parent=1 // pred_fallthru
      _
    // Predicated region
    $region22: #{encoder_forward.1} parent=1 // pred_check
      _
    $region23: #{encoder_forward.1} parent=1 // pred_check_branch
      %51 = sbr.rel (0) target = $region25
    $region24: #{encoder_forward.1} parent=1 // pred_region
      %53 = vsyncadd [#allocation5], 0
      %s54 = sshll.u32 %s5, 4
      %s55 = int_to_ptr.hbm [resolvable:$true] %s54
      %s56 = sshll.u32 [#allocation6], 4
      %s57 = int_to_ptr.vmem [resolvable:$true] %s56
      %62 = dma.hbm_to_vmem [thread:$0]  %s55, 6144, %s57, [#allocation5], 384, 384, 24
    $region25: #{encoder_forward.1} parent=1 // pred_fallthru
      _
    // Predicated region
    $region26: #{encoder_forward.1} parent=1 // pred_check
      _
    $region27: #{encoder_forward.1} parent=1 // pred_check_branch
      %64 = sbr.rel (0) target = $region29
    $region28: #{encoder_forward.1} parent=1 // pred_region
      _
    $region29: #{encoder_forward.1} parent=1 // pred_fallthru
      _
    // Predicated region
    $region30: #{encoder_forward.1} parent=1 // pred_check
      _
    $region31: #{encoder_forward.1} parent=1 // pred_check_branch
      %66 = sbr.rel (0) target = $region33
    $region32: #{encoder_forward.1} parent=1 // pred_region
      _
    $region33: #{encoder_forward.1} parent=1 // pred_fallthru
      _
    // Predicated region
    $region34: #{encoder_forward.1} parent=1 // pred_check
      _
    $region35: #{encoder_forward.1} parent=1 // pred_check_branch
      %68 = sbr.rel (0) target = $region37
    $region36: #{encoder_forward.1} parent=1 // pred_region
      _
    $region37: #{encoder_forward.1} parent=1 // pred_fallthru
      _
    // Predicated region
    $region38: #{encoder_forward.1} parent=1 // pred_check
      _
    $region39: #{encoder_forward.1} parent=1 // pred_check_branch
      %70 = sbr.rel (0) target = $region41
    $region40: #{encoder_forward.1} parent=1 // pred_region
      %72 = dma.done [#allocation3], 6144
    $region41: #{encoder_forward.1} parent=1 // pred_fallthru
      _
    // Predicated region
    $region42: #{encoder_forward.1} parent=1 // pred_check
      _
    $region43: #{encoder_forward.1} parent=1 // pred_check_branch
      %74 = sbr.rel (0) target = $region45
    $region44: #{encoder_forward.1} parent=1 // pred_region
      %76 = dma.done [#allocation5], 6144
    $region45: #{encoder_forward.1} parent=1 // pred_fallthru
      _
    // Predicated region
    $region46: #{encoder_forward.1} parent=1 // pred_check
      _
    $region47: #{encoder_forward.1} parent=1 // pred_check_branch
      %78 = sbr.rel (0) target = $region49
    $region48: #{encoder_forward.1} parent=1 // pred_region
      %80 = dma.done [#allocation5], 6144
    $region49: #{encoder_forward.1} parent=1 // pred_fallthru
      _
    %v81 = vlaneseq
    %v82 = vand.u32 %v81, 127
    %v83 = vld [vmem:[%s0] sm:$0xff]
    %v84 = vld [vmem:[%s0 + $0x8] sm:$0xff]
    %v85 = vld [vmem:[%s0 + $0x10] sm:$0xff]
    %v86 = vld [vmem:[%s0 + $0x18] sm:$0xff]
    %v87 = vld [vmem:[%s0 + $0x20] sm:$0xff]
    %v88 = vld [vmem:[%s0 + $0x28] sm:$0xff]
    %v89 = vld [vmem:[%s0 + $0x30] sm:$0xff]
    %v90 = vld [vmem:[%s0 + $0x38] sm:$0xff]
    %91 = vset.pattern.permute.xlu0 0
    %92 = vperm.xlu0 %91, %v83
    %v93 = vpop.permute.xlu0 %92
    %94 = vset.pattern.permute.xlu0 0
    %95 = vperm.xlu0 %94, %v84
    %v96 = vpop.permute.xlu0 %95
    %97 = vset.pattern.permute.xlu0 0
    %98 = vperm.xlu0 %97, %v85
    %v99 = vpop.permute.xlu0 %98
    %100 = vset.pattern.permute.xlu0 0
    %101 = vperm.xlu0 %100, %v86
    %v102 = vpop.permute.xlu0 %101
    %103 = vset.pattern.permute.xlu0 0
    %104 = vperm.xlu0 %103, %v87
    %v105 = vpop.permute.xlu0 %104
    %106 = vset.pattern.permute.xlu0 0
    %107 = vperm.xlu0 %106, %v88
    %v108 = vpop.permute.xlu0 %107
    %109 = vset.pattern.permute.xlu0 0
    %110 = vperm.xlu0 %109, %v89
    %v111 = vpop.permute.xlu0 %110
    %112 = vset.pattern.permute.xlu0 0
    %113 = vperm.xlu0 %112, %v90
    %v114 = vpop.permute.xlu0 %113
    %vm115 = vcmp.eq.s32.totalorder %v93, %v82
    %vm116 = vcmp.eq.s32.totalorder %v96, %v82
    %vm117 = vcmp.eq.s32.totalorder %v99, %v82
    %vm118 = vcmp.eq.s32.totalorder %v102, %v82
    %vm119 = vcmp.eq.s32.totalorder %v105, %v82
    %vm120 = vcmp.eq.s32.totalorder %v108, %v82
    %vm121 = vcmp.eq.s32.totalorder %v111, %v82
    %vm122 = vcmp.eq.s32.totalorder %v114, %v82
    %v123 = vsel %vm115, 1, 0
    %v124 = vsel %vm116, 1, 0
    %v125 = vsel %vm117, 1, 0
    %v126 = vsel %vm118, 1, 0
    %v127 = vsel %vm119, 1, 0
    %v128 = vsel %vm120, 1, 0
    %v129 = vsel %vm121, 1, 0
    %v130 = vsel %vm122, 1, 0
    %v131 = vcvt.s32.f32 %v123
    %v132 = vcvt.s32.f32 %v124
    %v133 = vcvt.s32.f32 %v125
    %v134 = vcvt.s32.f32 %v126
    %v135 = vcvt.s32.f32 %v127
    %v136 = vcvt.s32.f32 %v128
    %v137 = vcvt.s32.f32 %v129
    %v138 = vcvt.s32.f32 %v130
    %v139 = vld [vmem:[%s1] sm:$0xff]
    %v140 = vld [vmem:[%s1 + $0x8] sm:$0xff]
    %v141 = vld [vmem:[%s1 + $0x10] sm:$0xff]
    %v142 = vld [vmem:[%s1 + $0x18] sm:$0xff]
    %v143 = vld [vmem:[%s1 + $0x20] sm:$0xff]
    %v144 = vld [vmem:[%s1 + $0x28] sm:$0xff]
    %v145 = vld [vmem:[%s1 + $0x30] sm:$0xff]
    %v146 = vld [vmem:[%s1 + $0x38] sm:$0xff]
    %147 = vset.pattern.permute.xlu0 0
    %148 = vperm.xlu0 %147, %v139
    %v149 = vpop.permute.xlu0 %148
    %150 = vset.pattern.permute.xlu0 0
    %151 = vperm.xlu0 %150, %v140
    %v152 = vpop.permute.xlu0 %151
    %153 = vset.pattern.permute.xlu0 0
    %154 = vperm.xlu0 %153, %v141
    %v155 = vpop.permute.xlu0 %154
    %156 = vset.pattern.permute.xlu0 0
    %157 = vperm.xlu0 %156, %v142
    %v158 = vpop.permute.xlu0 %157
    %159 = vset.pattern.permute.xlu0 0
    %160 = vperm.xlu0 %159, %v143
    %v161 = vpop.permute.xlu0 %160
    %162 = vset.pattern.permute.xlu0 0
    %163 = vperm.xlu0 %162, %v144
    %v164 = vpop.permute.xlu0 %163
    %165 = vset.pattern.permute.xlu0 0
    %166 = vperm.xlu0 %165, %v145
    %v167 = vpop.permute.xlu0 %166
    %168 = vset.pattern.permute.xlu0 0
    %169 = vperm.xlu0 %168, %v146
    %v170 = vpop.permute.xlu0 %169
    %vm171 = vcmp.eq.s32.totalorder %v149, %v82
    %vm172 = vcmp.eq.s32.totalorder %v152, %v82
    %vm173 = vcmp.eq.s32.totalorder %v155, %v82
    %vm174 = vcmp.eq.s32.totalorder %v158, %v82
    %vm175 = vcmp.eq.s32.totalorder %v161, %v82
    %vm176 = vcmp.eq.s32.totalorder %v164, %v82
    %vm177 = vcmp.eq.s32.totalorder %v167, %v82
    %vm178 = vcmp.eq.s32.totalorder %v170, %v82
    %v179 = vsel %vm171, 1, 0
    %v180 = vsel %vm172, 1, 0
    %v181 = vsel %vm173, 1, 0
    %v182 = vsel %vm174, 1, 0
    %v183 = vsel %vm175, 1, 0
    %v184 = vsel %vm176, 1, 0
    %v185 = vsel %vm177, 1, 0
    %v186 = vsel %vm178, 1, 0
    %v187 = vcvt.s32.f32 %v179
    %v188 = vcvt.s32.f32 %v180
    %v189 = vcvt.s32.f32 %v181
    %v190 = vcvt.s32.f32 %v182
    %v191 = vcvt.s32.f32 %v183
    %v192 = vcvt.s32.f32 %v184
    %v193 = vcvt.s32.f32 %v185
    %v194 = vcvt.s32.f32 %v186
    %v195 = vld [vmem:[#allocation2] sm:$0xff]
    %v196 = vld [vmem:[#allocation2 + $0x8] sm:$0xff]
    %v197 = vld [vmem:[#allocation2 + $0x10] sm:$0xff]
    %v198 = vld [vmem:[#allocation2 + $0x18] sm:$0xff]
    %v199 = vld [vmem:[#allocation2 + $0x20] sm:$0xff]
    %v200 = vld [vmem:[#allocation2 + $0x28] sm:$0xff]
    %v201 = vld [vmem:[#allocation2 + $0x30] sm:$0xff]
    %v202 = vld [vmem:[#allocation2 + $0x38] sm:$0xff]
    %v203 = vld [vmem:[#allocation2 + $0x40] sm:$0xff]
    %v204 = vld [vmem:[#allocation2 + $0x48] sm:$0xff]
    %v205 = vld [vmem:[#allocation2 + $0x50] sm:$0xff]
    %v206 = vld [vmem:[#allocation2 + $0x58] sm:$0xff]
    %v207 = vld [vmem:[#allocation2 + $0x60] sm:$0xff]
    %v208 = vld [vmem:[#allocation2 + $0x68] sm:$0xff]
    %v209 = vld [vmem:[#allocation2 + $0x70] sm:$0xff]
    %v210 = vld [vmem:[#allocation2 + $0x78] sm:$0xff]
    %v211 = vld [vmem:[#allocation2 + $0x80] sm:$0xff]
    %v212 = vld [vmem:[#allocation2 + $0x88] sm:$0xff]
    %v213 = vld [vmem:[#allocation2 + $0x90] sm:$0xff]
    %v214 = vld [vmem:[#allocation2 + $0x98] sm:$0xff]
    %v215 = vld [vmem:[#allocation2 + $0xa0] sm:$0xff]
    %v216 = vld [vmem:[#allocation2 + $0xa8] sm:$0xff]
    %v217 = vld [vmem:[#allocation2 + $0xb0] sm:$0xff]
    %v218 = vld [vmem:[#allocation2 + $0xb8] sm:$0xff]
    %v219 = vld [vmem:[#allocation2 + $0xc0] sm:$0xff]
    %v220 = vld [vmem:[#allocation2 + $0xc8] sm:$0xff]
    %v221 = vld [vmem:[#allocation2 + $0xd0] sm:$0xff]
    %v222 = vld [vmem:[#allocation2 + $0xd8] sm:$0xff]
    %v223 = vld [vmem:[#allocation2 + $0xe0] sm:$0xff]
    %v224 = vld [vmem:[#allocation2 + $0xe8] sm:$0xff]
    %v225 = vld [vmem:[#allocation2 + $0xf0] sm:$0xff]
    %v226 = vld [vmem:[#allocation2 + $0xf8] sm:$0xff]
    %v227 = vld [vmem:[#allocation2 + $0x100] sm:$0xff]
    %v228 = vld [vmem:[#allocation2 + $0x108] sm:$0xff]
    %v229 = vld [vmem:[#allocation2 + $0x110] sm:$0xff]
    %v230 = vld [vmem:[#allocation2 + $0x118] sm:$0xff]
    %v231 = vld [vmem:[#allocation2 + $0x120] sm:$0xff]
    %v232 = vld [vmem:[#allocation2 + $0x128] sm:$0xff]
    %v233 = vld [vmem:[#allocation2 + $0x130] sm:$0xff]
    %v234 = vld [vmem:[#allocation2 + $0x138] sm:$0xff]
    %v235 = vld [vmem:[#allocation2 + $0x140] sm:$0xff]
    %v236 = vld [vmem:[#allocation2 + $0x148] sm:$0xff]
    %v237 = vld [vmem:[#allocation2 + $0x150] sm:$0xff]
    %v238 = vld [vmem:[#allocation2 + $0x158] sm:$0xff]
    %v239 = vld [vmem:[#allocation2 + $0x160] sm:$0xff]
    %v240 = vld [vmem:[#allocation2 + $0x168] sm:$0xff]
    %v241 = vld [vmem:[#allocation2 + $0x170] sm:$0xff]
    %v242 = vld [vmem:[#allocation2 + $0x178] sm:$0xff]
    %v243 = vld [vmem:[#allocation4] sm:$0xff]
    %v244 = vld [vmem:[#allocation4 + $0x8] sm:$0xff]
    %v245 = vld [vmem:[#allocation4 + $0x10] sm:$0xff]
    %v246 = vld [vmem:[#allocation4 + $0x18] sm:$0xff]
    %v247 = vld [vmem:[#allocation4 + $0x20] sm:$0xff]
    %v248 = vld [vmem:[#allocation4 + $0x28] sm:$0xff]
    %v249 = vld [vmem:[#allocation4 + $0x30] sm:$0xff]
    %v250 = vld [vmem:[#allocation4 + $0x38] sm:$0xff]
    %v251 = vld [vmem:[#allocation4 + $0x40] sm:$0xff]
    %v252 = vld [vmem:[#allocation4 + $0x48] sm:$0xff]
    %v253 = vld [vmem:[#allocation4 + $0x50] sm:$0xff]
    %v254 = vld [vmem:[#allocation4 + $0x58] sm:$0xff]
    %v255 = vld [vmem:[#allocation4 + $0x60] sm:$0xff]
    %v256 = vld [vmem:[#allocation4 + $0x68] sm:$0xff]
    %v257 = vld [vmem:[#allocation4 + $0x70] sm:$0xff]
    %v258 = vld [vmem:[#allocation4 + $0x78] sm:$0xff]
    %v259 = vld [vmem:[#allocation4 + $0x80] sm:$0xff]
    %v260 = vld [vmem:[#allocation4 + $0x88] sm:$0xff]
    %v261 = vld [vmem:[#allocation4 + $0x90] sm:$0xff]
    %v262 = vld [vmem:[#allocation4 + $0x98] sm:$0xff]
    %v263 = vld [vmem:[#allocation4 + $0xa0] sm:$0xff]
    %v264 = vld [vmem:[#allocation4 + $0xa8] sm:$0xff]
    %v265 = vld [vmem:[#allocation4 + $0xb0] sm:$0xff]
    %v266 = vld [vmem:[#allocation4 + $0xb8] sm:$0xff]
    %v267 = vld [vmem:[#allocation4 + $0xc0] sm:$0xff]
    %v268 = vld [vmem:[#allocation4 + $0xc8] sm:$0xff]
    %v269 = vld [vmem:[#allocation4 + $0xd0] sm:$0xff]
    %v270 = vld [vmem:[#allocation4 + $0xd8] sm:$0xff]
    %v271 = vld [vmem:[#allocation4 + $0xe0] sm:$0xff]
    %v272 = vld [vmem:[#allocation4 + $0xe8] sm:$0xff]
    %v273 = vld [vmem:[#allocation4 + $0xf0] sm:$0xff]
    %v274 = vld [vmem:[#allocation4 + $0xf8] sm:$0xff]
    %v275 = vld [vmem:[#allocation4 + $0x100] sm:$0xff]
    %v276 = vld [vmem:[#allocation4 + $0x108] sm:$0xff]
    %v277 = vld [vmem:[#allocation4 + $0x110] sm:$0xff]
    %v278 = vld [vmem:[#allocation4 + $0x118] sm:$0xff]
    %v279 = vld [vmem:[#allocation4 + $0x120] sm:$0xff]
    %v280 = vld [vmem:[#allocation4 + $0x128] sm:$0xff]
    %v281 = vld [vmem:[#allocation4 + $0x130] sm:$0xff]
    %v282 = vld [vmem:[#allocation4 + $0x138] sm:$0xff]
    %v283 = vld [vmem:[#allocation4 + $0x140] sm:$0xff]
    %v284 = vld [vmem:[#allocation4 + $0x148] sm:$0xff]
    %v285 = vld [vmem:[#allocation4 + $0x150] sm:$0xff]
    %v286 = vld [vmem:[#allocation4 + $0x158] sm:$0xff]
    %v287 = vld [vmem:[#allocation4 + $0x160] sm:$0xff]
    %v288 = vld [vmem:[#allocation4 + $0x168] sm:$0xff]
    %v289 = vld [vmem:[#allocation4 + $0x170] sm:$0xff]
    %v290 = vld [vmem:[#allocation4 + $0x178] sm:$0xff]
    %291 = vmatpush.msra.mxu0 %v288
    %292 = vmatpush.msra.mxu0 %v285
    %293 = vmatpush.msra.mxu0 %v282
    %294 = vmatpush.msra.mxu0 %v279
    %295 = vmatpush.msra.mxu0 %v276
    %296 = vmatpush.msra.mxu0 %v273
    %297 = vmatpush.msra.mxu0 %v270
    %298 = vmatpush.msra.mxu0 %v267
    %299 = vmatpush.msra.mxu0 %v264
    %300 = vmatpush.msra.mxu0 %v261
    %301 = vmatpush.msra.mxu0 %v258
    %302 = vmatpush.msra.mxu0 %v255
    %303 = vmatpush.msra.mxu0 %v252
    %304 = vmatpush.msra.mxu0 %v249
    %305 = vmatpush.msra.mxu0 %v246
    %306 = vmatpush.msra.mxu0 %v243
    %307 = vmatmul.f32.gmra.mxu0 %v187
    %v308 = vpop.f32.mrf.mxu0
    %v309 = vadd.f32 0.0, %v308
    %310 = vmatmul.f32.gmra.mxu0 %v188
    %v311 = vpop.f32.mrf.mxu0
    %v312 = vadd.f32 0.0, %v311
    %313 = vmatmul.f32.gmra.mxu0 %v189
    %v314 = vpop.f32.mrf.mxu0
    %v315 = vadd.f32 0.0, %v314
    %316 = vmatmul.f32.gmra.mxu0 %v190
    %v317 = vpop.f32.mrf.mxu0
    %v318 = vadd.f32 0.0, %v317
    %319 = vmatmul.f32.gmra.mxu0 %v191
    %v320 = vpop.f32.mrf.mxu0
    %v321 = vadd.f32 0.0, %v320
    %322 = vmatmul.f32.gmra.mxu0 %v192
    %v323 = vpop.f32.mrf.mxu0
    %v324 = vadd.f32 0.0, %v323
    %325 = vmatmul.f32.gmra.mxu0 %v193
    %v326 = vpop.f32.mrf.mxu0
    %v327 = vadd.f32 0.0, %v326
    %328 = vmatmul.f32.gmra.mxu0 %v194
    %v329 = vpop.f32.mrf.mxu0
    %v330 = vadd.f32 0.0, %v329
    %331 = vdwg.mxu0
    %332 = vmatpush.msra.mxu0 %v289
    %333 = vmatpush.msra.mxu0 %v286
    %334 = vmatpush.msra.mxu0 %v283
    %335 = vmatpush.msra.mxu0 %v280
    %336 = vmatpush.msra.mxu0 %v277
    %337 = vmatpush.msra.mxu0 %v274
    %338 = vmatpush.msra.mxu0 %v271
    %339 = vmatpush.msra.mxu0 %v268
    %340 = vmatpush.msra.mxu0 %v265
    %341 = vmatpush.msra.mxu0 %v262
    %342 = vmatpush.msra.mxu0 %v259
    %343 = vmatpush.msra.mxu0 %v256
    %344 = vmatpush.msra.mxu0 %v253
    %345 = vmatpush.msra.mxu0 %v250
    %346 = vmatpush.msra.mxu0 %v247
    %347 = vmatpush.msra.mxu0 %v244
    %348 = vmatmul.f32.gmra.mxu0 %v187
    %v349 = vpop.f32.mrf.mxu0
    %v350 = vadd.f32 0.0, %v349
    %351 = vmatmul.f32.gmra.mxu0 %v188
    %v352 = vpop.f32.mrf.mxu0
    %v353 = vadd.f32 0.0, %v352
    %354 = vmatmul.f32.gmra.mxu0 %v189
    %v355 = vpop.f32.mrf.mxu0
    %v356 = vadd.f32 0.0, %v355
    %357 = vmatmul.f32.gmra.mxu0 %v190
    %v358 = vpop.f32.mrf.mxu0
    %v359 = vadd.f32 0.0, %v358
    %360 = vmatmul.f32.gmra.mxu0 %v191
    %v361 = vpop.f32.mrf.mxu0
    %v362 = vadd.f32 0.0, %v361
    %363 = vmatmul.f32.gmra.mxu0 %v192
    %v364 = vpop.f32.mrf.mxu0
    %v365 = vadd.f32 0.0, %v364
    %366 = vmatmul.f32.gmra.mxu0 %v193
    %v367 = vpop.f32.mrf.mxu0
    %v368 = vadd.f32 0.0, %v367
    %369 = vmatmul.f32.gmra.mxu0 %v194
    %v370 = vpop.f32.mrf.mxu0
    %v371 = vadd.f32 0.0, %v370
    %372 = vdwg.mxu0
    %373 = vmatpush.msra.mxu0 %v290
    %374 = vmatpush.msra.mxu0 %v287
    %375 = vmatpush.msra.mxu0 %v284
    %376 = vmatpush.msra.mxu0 %v281
    %377 = vmatpush.msra.mxu0 %v278
    %378 = vmatpush.msra.mxu0 %v275
    %379 = vmatpush.msra.mxu0 %v272
    %380 = vmatpush.msra.mxu0 %v269
    %381 = vmatpush.msra.mxu0 %v266
    %382 = vmatpush.msra.mxu0 %v263
    %383 = vmatpush.msra.mxu0 %v260
    %384 = vmatpush.msra.mxu0 %v257
    %385 = vmatpush.msra.mxu0 %v254
    %386 = vmatpush.msra.mxu0 %v251
    %387 = vmatpush.msra.mxu0 %v248
    %388 = vmatpush.msra.mxu0 %v245
    %389 = vmatmul.f32.gmra.mxu0 %v187
    %v390 = vpop.f32.mrf.mxu0
    %v391 = vadd.f32 0.0, %v390
    %392 = vmatmul.f32.gmra.mxu0 %v188
    %v393 = vpop.f32.mrf.mxu0
    %v394 = vadd.f32 0.0, %v393
    %395 = vmatmul.f32.gmra.mxu0 %v189
    %v396 = vpop.f32.mrf.mxu0
    %v397 = vadd.f32 0.0, %v396
    %398 = vmatmul.f32.gmra.mxu0 %v190
    %v399 = vpop.f32.mrf.mxu0
    %v400 = vadd.f32 0.0, %v399
    %401 = vmatmul.f32.gmra.mxu0 %v191
    %v402 = vpop.f32.mrf.mxu0
    %v403 = vadd.f32 0.0, %v402
    %404 = vmatmul.f32.gmra.mxu0 %v192
    %v405 = vpop.f32.mrf.mxu0
    %v406 = vadd.f32 0.0, %v405
    %407 = vmatmul.f32.gmra.mxu0 %v193
    %v408 = vpop.f32.mrf.mxu0
    %v409 = vadd.f32 0.0, %v408
    %410 = vmatmul.f32.gmra.mxu0 %v194
    %v411 = vpop.f32.mrf.mxu0
    %v412 = vadd.f32 0.0, %v411
    %413 = vdwg.mxu0
    %414 = vmatpush.msra.mxu0 %v240
    %415 = vmatpush.msra.mxu0 %v237
    %416 = vmatpush.msra.mxu0 %v234
    %417 = vmatpush.msra.mxu0 %v231
    %418 = vmatpush.msra.mxu0 %v228
    %419 = vmatpush.msra.mxu0 %v225
    %420 = vmatpush.msra.mxu0 %v222
    %421 = vmatpush.msra.mxu0 %v219
    %422 = vmatpush.msra.mxu0 %v216
    %423 = vmatpush.msra.mxu0 %v213
    %424 = vmatpush.msra.mxu0 %v210
    %425 = vmatpush.msra.mxu0 %v207
    %426 = vmatpush.msra.mxu0 %v204
    %427 = vmatpush.msra.mxu0 %v201
    %428 = vmatpush.msra.mxu0 %v198
    %429 = vmatpush.msra.mxu0 %v195
    %430 = vmatmul.f32.gmra.mxu0 %v131
    %v431 = vpop.f32.mrf.mxu0
    %v432 = vadd.f32 %v309, %v431
    %433 = vmatmul.f32.gmra.mxu0 %v132
    %v434 = vpop.f32.mrf.mxu0
    %v435 = vadd.f32 %v312, %v434
    %436 = vmatmul.f32.gmra.mxu0 %v133
    %v437 = vpop.f32.mrf.mxu0
    %v438 = vadd.f32 %v315, %v437
    %439 = vmatmul.f32.gmra.mxu0 %v134
    %v440 = vpop.f32.mrf.mxu0
    %v441 = vadd.f32 %v318, %v440
    %442 = vmatmul.f32.gmra.mxu0 %v135
    %v443 = vpop.f32.mrf.mxu0
    %v444 = vadd.f32 %v321, %v443
    %445 = vmatmul.f32.gmra.mxu0 %v136
    %v446 = vpop.f32.mrf.mxu0
    %v447 = vadd.f32 %v324, %v446
    %448 = vmatmul.f32.gmra.mxu0 %v137
    %v449 = vpop.f32.mrf.mxu0
    %v450 = vadd.f32 %v327, %v449
    %451 = vmatmul.f32.gmra.mxu0 %v138
    %v452 = vpop.f32.mrf.mxu0
    %v453 = vadd.f32 %v330, %v452
    %454 = vdwg.mxu0
    %455 = vmatpush.msra.mxu0 %v241
    %456 = vmatpush.msra.mxu0 %v238
    %457 = vmatpush.msra.mxu0 %v235
    %458 = vmatpush.msra.mxu0 %v232
    %459 = vmatpush.msra.mxu0 %v229
    %460 = vmatpush.msra.mxu0 %v226
    %461 = vmatpush.msra.mxu0 %v223
    %462 = vmatpush.msra.mxu0 %v220
    %463 = vmatpush.msra.mxu0 %v217
    %464 = vmatpush.msra.mxu0 %v214
    %465 = vmatpush.msra.mxu0 %v211
    %466 = vmatpush.msra.mxu0 %v208
    %467 = vmatpush.msra.mxu0 %v205
    %468 = vmatpush.msra.mxu0 %v202
    %469 = vmatpush.msra.mxu0 %v199
    %470 = vmatpush.msra.mxu0 %v196
    %471 = vmatmul.f32.gmra.mxu0 %v131
    %v472 = vpop.f32.mrf.mxu0
    %v473 = vadd.f32 %v350, %v472
    %474 = vmatmul.f32.gmra.mxu0 %v132
    %v475 = vpop.f32.mrf.mxu0
    %v476 = vadd.f32 %v353, %v475
    %477 = vmatmul.f32.gmra.mxu0 %v133
    %v478 = vpop.f32.mrf.mxu0
    %v479 = vadd.f32 %v356, %v478
    %480 = vmatmul.f32.gmra.mxu0 %v134
    %v481 = vpop.f32.mrf.mxu0
    %v482 = vadd.f32 %v359, %v481
    %483 = vmatmul.f32.gmra.mxu0 %v135
    %v484 = vpop.f32.mrf.mxu0
    %v485 = vadd.f32 %v362, %v484
    %486 = vmatmul.f32.gmra.mxu0 %v136
    %v487 = vpop.f32.mrf.mxu0
    %v488 = vadd.f32 %v365, %v487
    %489 = vmatmul.f32.gmra.mxu0 %v137
    %v490 = vpop.f32.mrf.mxu0
    %v491 = vadd.f32 %v368, %v490
    %492 = vmatmul.f32.gmra.mxu0 %v138
    %v493 = vpop.f32.mrf.mxu0
    %v494 = vadd.f32 %v371, %v493
    %495 = vdwg.mxu0
    %496 = vmatpush.msra.mxu0 %v242
    %497 = vmatpush.msra.mxu0 %v239
    %498 = vmatpush.msra.mxu0 %v236
    %499 = vmatpush.msra.mxu0 %v233
    %500 = vmatpush.msra.mxu0 %v230
    %501 = vmatpush.msra.mxu0 %v227
    %502 = vmatpush.msra.mxu0 %v224
    %503 = vmatpush.msra.mxu0 %v221
    %504 = vmatpush.msra.mxu0 %v218
    %505 = vmatpush.msra.mxu0 %v215
    %506 = vmatpush.msra.mxu0 %v212
    %507 = vmatpush.msra.mxu0 %v209
    %508 = vmatpush.msra.mxu0 %v206
    %509 = vmatpush.msra.mxu0 %v203
    %510 = vmatpush.msra.mxu0 %v200
    %511 = vmatpush.msra.mxu0 %v197
    %512 = vmatmul.f32.gmra.mxu0 %v131
    %v513 = vpop.f32.mrf.mxu0
    %v514 = vadd.f32 %v391, %v513
    %515 = vmatmul.f32.gmra.mxu0 %v132
    %v516 = vpop.f32.mrf.mxu0
    %v517 = vadd.f32 %v394, %v516
    %518 = vmatmul.f32.gmra.mxu0 %v133
    %v519 = vpop.f32.mrf.mxu0
    %v520 = vadd.f32 %v397, %v519
    %521 = vmatmul.f32.gmra.mxu0 %v134
    %v522 = vpop.f32.mrf.mxu0
    %v523 = vadd.f32 %v400, %v522
    %524 = vmatmul.f32.gmra.mxu0 %v135
    %v525 = vpop.f32.mrf.mxu0
    %v526 = vadd.f32 %v403, %v525
    %527 = vmatmul.f32.gmra.mxu0 %v136
    %v528 = vpop.f32.mrf.mxu0
    %v529 = vadd.f32 %v406, %v528
    %530 = vmatmul.f32.gmra.mxu0 %v137
    %v531 = vpop.f32.mrf.mxu0
    %v532 = vadd.f32 %v409, %v531
    %533 = vmatmul.f32.gmra.mxu0 %v138
    %v534 = vpop.f32.mrf.mxu0
    %v535 = vadd.f32 %v412, %v534
    %536 = vdwg.mxu0
    %v537 = vld [vmem:[%s4] sm:$0x7]
    %v539 = vperm.slane %v537, 0
    %v540 = vperm.slane %v537, 1
    %v541 = vperm.slane %v537, 2
    %v545 = vadd.f32 %v432, %v539
    %v546 = vadd.f32 %v473, %v540
    %v547 = vadd.f32 %v514, %v541
    %v548 = vadd.f32 %v435, %v539
    %v549 = vadd.f32 %v476, %v540
    %v550 = vadd.f32 %v517, %v541
    %v551 = vadd.f32 %v438, %v539
    %v552 = vadd.f32 %v479, %v540
    %v553 = vadd.f32 %v520, %v541
    %v554 = vadd.f32 %v441, %v539
    %v555 = vadd.f32 %v482, %v540
    %v556 = vadd.f32 %v523, %v541
    %v557 = vadd.f32 %v444, %v539
    %v558 = vadd.f32 %v485, %v540
    %v559 = vadd.f32 %v526, %v541
    %v560 = vadd.f32 %v447, %v539
    %v561 = vadd.f32 %v488, %v540
    %v562 = vadd.f32 %v529, %v541
    %v563 = vadd.f32 %v450, %v539
    %v564 = vadd.f32 %v491, %v540
    %v565 = vadd.f32 %v532, %v541
    %v566 = vadd.f32 %v453, %v539
    %v567 = vadd.f32 %v494, %v540
    %v568 = vadd.f32 %v535, %v541
    %v569 = vld [vmem:[#allocation6] sm:$0xff]
    %v570 = vld [vmem:[#allocation6 + $0x8] sm:$0xff]
    %v571 = vld [vmem:[#allocation6 + $0x10] sm:$0xff]
    %v572 = vld [vmem:[#allocation6 + $0x18] sm:$0xff]
    %v573 = vld [vmem:[#allocation6 + $0x20] sm:$0xff]
    %v574 = vld [vmem:[#allocation6 + $0x28] sm:$0xff]
    %v575 = vld [vmem:[#allocation6 + $0x30] sm:$0xff]
    %v576 = vld [vmem:[#allocation6 + $0x38] sm:$0xff]
    %v577 = vld [vmem:[#allocation6 + $0x40] sm:$0xff]
    %v578 = vld [vmem:[#allocation6 + $0x48] sm:$0xff]
    %v579 = vld [vmem:[#allocation6 + $0x50] sm:$0xff]
    %v580 = vld [vmem:[#allocation6 + $0x58] sm:$0xff]
    %v581 = vld [vmem:[#allocation6 + $0x60] sm:$0xff]
    %v582 = vld [vmem:[#allocation6 + $0x68] sm:$0xff]
    %v583 = vld [vmem:[#allocation6 + $0x70] sm:$0xff]
    %v584 = vld [vmem:[#allocation6 + $0x78] sm:$0xff]
    %v585 = vld [vmem:[#allocation6 + $0x80] sm:$0xff]
    %v586 = vld [vmem:[#allocation6 + $0x88] sm:$0xff]
    %v587 = vld [vmem:[#allocation6 + $0x90] sm:$0xff]
    %v588 = vld [vmem:[#allocation6 + $0x98] sm:$0xff]
    %v589 = vld [vmem:[#allocation6 + $0xa0] sm:$0xff]
    %v590 = vld [vmem:[#allocation6 + $0xa8] sm:$0xff]
    %v591 = vld [vmem:[#allocation6 + $0xb0] sm:$0xff]
    %v592 = vld [vmem:[#allocation6 + $0xb8] sm:$0xff]
    %v593 = vld [vmem:[#allocation6 + $0xc0] sm:$0xff]
    %v594 = vld [vmem:[#allocation6 + $0xc8] sm:$0xff]
    %v595 = vld [vmem:[#allocation6 + $0xd0] sm:$0xff]
    %v596 = vld [vmem:[#allocation6 + $0xd8] sm:$0xff]
    %v597 = vld [vmem:[#allocation6 + $0xe0] sm:$0xff]
    %v598 = vld [vmem:[#allocation6 + $0xe8] sm:$0xff]
    %v599 = vld [vmem:[#allocation6 + $0xf0] sm:$0xff]
    %v600 = vld [vmem:[#allocation6 + $0xf8] sm:$0xff]
    %v601 = vld [vmem:[#allocation6 + $0x100] sm:$0xff]
    %v602 = vld [vmem:[#allocation6 + $0x108] sm:$0xff]
    %v603 = vld [vmem:[#allocation6 + $0x110] sm:$0xff]
    %v604 = vld [vmem:[#allocation6 + $0x118] sm:$0xff]
    %v605 = vld [vmem:[#allocation6 + $0x120] sm:$0xff]
    %v606 = vld [vmem:[#allocation6 + $0x128] sm:$0xff]
    %v607 = vld [vmem:[#allocation6 + $0x130] sm:$0xff]
    %v608 = vld [vmem:[#allocation6 + $0x138] sm:$0xff]
    %v609 = vld [vmem:[#allocation6 + $0x140] sm:$0xff]
    %v610 = vld [vmem:[#allocation6 + $0x148] sm:$0xff]
    %v611 = vld [vmem:[#allocation6 + $0x150] sm:$0xff]
    %v612 = vld [vmem:[#allocation6 + $0x158] sm:$0xff]
    %v613 = vld [vmem:[#allocation6 + $0x160] sm:$0xff]
    %v614 = vld [vmem:[#allocation6 + $0x168] sm:$0xff]
    %v615 = vld [vmem:[#allocation6 + $0x170] sm:$0xff]
    %v616 = vld [vmem:[#allocation6 + $0x178] sm:$0xff]
    %v617 = vld [vmem:[%s6] sm:$0x1]
    %v619 = vperm.slane %v617, 0
    %621 = vmatpush.msra.mxu0 %v614
    %622 = vmatpush.msra.mxu0 %v611
    %623 = vmatpush.msra.mxu0 %v608
    %624 = vmatpush.msra.mxu0 %v605
    %625 = vmatpush.msra.mxu0 %v602
    %626 = vmatpush.msra.mxu0 %v599
    %627 = vmatpush.msra.mxu0 %v596
    %628 = vmatpush.msra.mxu0 %v593
    %629 = vmatpush.msra.mxu0 %v590
    %630 = vmatpush.msra.mxu0 %v587
    %631 = vmatpush.msra.mxu0 %v584
    %632 = vmatpush.msra.mxu0 %v581
    %633 = vmatpush.msra.mxu0 %v578
    %634 = vmatpush.msra.mxu0 %v575
    %635 = vmatpush.msra.mxu0 %v572
    %636 = vmatpush.msra.mxu0 %v569
    %637 = vmatmul.f32.gmra.mxu0 0.0
    %v638 = vpop.f32.mrf.mxu0
    %v639 = vadd.f32 0.0, %v638
    %640 = vdwg.mxu0
    %641 = vmatpush.msra.mxu0 %v615
    %642 = vmatpush.msra.mxu0 %v612
    %643 = vmatpush.msra.mxu0 %v609
    %644 = vmatpush.msra.mxu0 %v606
    %645 = vmatpush.msra.mxu0 %v603
    %646 = vmatpush.msra.mxu0 %v600
    %647 = vmatpush.msra.mxu0 %v597
    %648 = vmatpush.msra.mxu0 %v594
    %649 = vmatpush.msra.mxu0 %v591
    %650 = vmatpush.msra.mxu0 %v588
    %651 = vmatpush.msra.mxu0 %v585
    %652 = vmatpush.msra.mxu0 %v582
    %653 = vmatpush.msra.mxu0 %v579
    %654 = vmatpush.msra.mxu0 %v576
    %655 = vmatpush.msra.mxu0 %v573
    %656 = vmatpush.msra.mxu0 %v570
    %657 = vmatmul.f32.gmra.mxu0 0.0
    %v658 = vpop.f32.mrf.mxu0
    %v659 = vadd.f32 0.0, %v658
    %660 = vdwg.mxu0
    %661 = vmatpush.msra.mxu0 %v616
    %662 = vmatpush.msra.mxu0 %v613
    %663 = vmatpush.msra.mxu0 %v610
    %664 = vmatpush.msra.mxu0 %v607
    %665 = vmatpush.msra.mxu0 %v604
    %666 = vmatpush.msra.mxu0 %v601
    %667 = vmatpush.msra.mxu0 %v598
    %668 = vmatpush.msra.mxu0 %v595
    %669 = vmatpush.msra.mxu0 %v592
    %670 = vmatpush.msra.mxu0 %v589
    %671 = vmatpush.msra.mxu0 %v586
    %672 = vmatpush.msra.mxu0 %v583
    %673 = vmatpush.msra.mxu0 %v580
    %674 = vmatpush.msra.mxu0 %v577
    %675 = vmatpush.msra.mxu0 %v574
    %676 = vmatpush.msra.mxu0 %v571
    %677 = vmatmul.f32.gmra.mxu0 0.0
    %v678 = vpop.f32.mrf.mxu0
    %v679 = vadd.f32 0.0, %v678
    %680 = vdwg.mxu0
    %v681 = vadd.f32 %v545, %v639
    %v682 = vadd.f32 %v546, %v659
    %v683 = vxor.u32 %v681, 2147483648
    %v684 = vxor.u32 %v682, 2147483648
    %v685 = vmul.f32 %v683, 1.442695
    %v686 = vpow.pop %v685
    %v687 = vmul.f32 %v684, 1.442695
    %v688 = vpow.pop %v687
    %v689 = vadd.f32 %v686, 1.0
    %v690 = vadd.f32 %v688, 1.0
    %v691 = vrcp.pop %v689
    %v692 = vmul.f32 %v689, %v691
    %v693 = vsub.f32 1.0, %v692
    %v694 = vmul.f32 %v691, %v693
    %v695 = vadd.f32 %v691, %v694
    %vm696 = vweird.f32 %v689
    %vm697 = vweird.f32 %v691
    %vm698 = vmor %vm696, %vm697
    %v699 = vsel %vm698, %v691, %v695
    %v700 = vand.u32 2147483647, %v689
    %vm701 = vcmp.eq.f32.partialorder %v700, 8.507059e+37
    %v702 = vand.u32 %v689, 2147483648
    %v703 = vor.u32 1.1754944e-38, %v702
    %v704 = vsel %vm701, %v703, %v699
    %v705 = vmul.f32 1.0, %v704
    %v706 = vrcp.pop %v690
    %v707 = vmul.f32 %v690, %v706
    %v708 = vsub.f32 1.0, %v707
    %v709 = vmul.f32 %v706, %v708
    %v710 = vadd.f32 %v706, %v709
    %vm711 = vweird.f32 %v690
    %vm712 = vweird.f32 %v706
    %vm713 = vmor %vm711, %vm712
    %v714 = vsel %vm713, %v706, %v710
    %v715 = vand.u32 2147483647, %v690
    %vm716 = vcmp.eq.f32.partialorder %v715, 8.507059e+37
    %v717 = vand.u32 %v690, 2147483648
    %v718 = vor.u32 1.1754944e-38, %v717
    %v719 = vsel %vm716, %v718, %v714
    %v720 = vmul.f32 1.0, %v719
    %v721 = vadd.f32 %v679, %v619
    %v722 = vmul.f32 %v705, %v721
    %v723 = vadd.f32 %v547, %v722
    %v724 = vtanh.pop %v723
    %v725 = vsub.f32 1.0, %v720
    %v726 = vmul.f32 %v725, %v724
    %v727 = vmul.f32 %v720, 0.0
    %v728 = vadd.f32 %v726, %v727
    %729 = vmatpush.msra.mxu0 %v614
    %730 = vmatpush.msra.mxu0 %v611
    %731 = vmatpush.msra.mxu0 %v608
    %732 = vmatpush.msra.mxu0 %v605
    %733 = vmatpush.msra.mxu0 %v602
    %734 = vmatpush.msra.mxu0 %v599
    %735 = vmatpush.msra.mxu0 %v596
    %736 = vmatpush.msra.mxu0 %v593
    %737 = vmatpush.msra.mxu0 %v590
    %738 = vmatpush.msra.mxu0 %v587
    %739 = vmatpush.msra.mxu0 %v584
    %740 = vmatpush.msra.mxu0 %v581
    %741 = vmatpush.msra.mxu0 %v578
    %742 = vmatpush.msra.mxu0 %v575
    %743 = vmatpush.msra.mxu0 %v572
    %744 = vmatpush.msra.mxu0 %v569
    %745 = vmatmul.f32.gmra.mxu0 %v728
    %v746 = vpop.f32.mrf.mxu0
    %v747 = vadd.f32 0.0, %v746
    %748 = vdwg.mxu0
    %749 = vmatpush.msra.mxu0 %v615
    %750 = vmatpush.msra.mxu0 %v612
    %751 = vmatpush.msra.mxu0 %v609
    %752 = vmatpush.msra.mxu0 %v606
    %753 = vmatpush.msra.mxu0 %v603
    %754 = vmatpush.msra.mxu0 %v600
    %755 = vmatpush.msra.mxu0 %v597
    %756 = vmatpush.msra.mxu0 %v594
    %757 = vmatpush.msra.mxu0 %v591
    %758 = vmatpush.msra.mxu0 %v588
    %759 = vmatpush.msra.mxu0 %v585
    %760 = vmatpush.msra.mxu0 %v582
    %761 = vmatpush.msra.mxu0 %v579
    %762 = vmatpush.msra.mxu0 %v576
    %763 = vmatpush.msra.mxu0 %v573
    %764 = vmatpush.msra.mxu0 %v570
    %765 = vmatmul.f32.gmra.mxu0 %v728
    %v766 = vpop.f32.mrf.mxu0
    %v767 = vadd.f32 0.0, %v766
    %768 = vdwg.mxu0
    %769 = vmatpush.msra.mxu0 %v616
    %770 = vmatpush.msra.mxu0 %v613
    %771 = vmatpush.msra.mxu0 %v610
    %772 = vmatpush.msra.mxu0 %v607
    %773 = vmatpush.msra.mxu0 %v604
    %774 = vmatpush.msra.mxu0 %v601
    %775 = vmatpush.msra.mxu0 %v598
    %776 = vmatpush.msra.mxu0 %v595
    %777 = vmatpush.msra.mxu0 %v592
    %778 = vmatpush.msra.mxu0 %v589
    %779 = vmatpush.msra.mxu0 %v586
    %780 = vmatpush.msra.mxu0 %v583
    %781 = vmatpush.msra.mxu0 %v580
    %782 = vmatpush.msra.mxu0 %v577
    %783 = vmatpush.msra.mxu0 %v574
    %784 = vmatpush.msra.mxu0 %v571
    %785 = vmatmul.f32.gmra.mxu0 %v728
    %v786 = vpop.f32.mrf.mxu0
    %v787 = vadd.f32 0.0, %v786
    %788 = vdwg.mxu0
    %v789 = vadd.f32 %v548, %v747
    %v790 = vadd.f32 %v549, %v767
    %v791 = vxor.u32 %v789, 2147483648
    %v792 = vxor.u32 %v790, 2147483648
    %v793 = vmul.f32 %v791, 1.442695
    %v794 = vpow.pop %v793
    %v795 = vmul.f32 %v792, 1.442695
    %v796 = vpow.pop %v795
    %v797 = vadd.f32 %v794, 1.0
    %v798 = vadd.f32 %v796, 1.0
    %v799 = vrcp.pop %v797
    %v800 = vmul.f32 %v797, %v799
    %v801 = vsub.f32 1.0, %v800
    %v802 = vmul.f32 %v799, %v801
    %v803 = vadd.f32 %v799, %v802
    %vm804 = vweird.f32 %v797
    %vm805 = vweird.f32 %v799
    %vm806 = vmor %vm804, %vm805
    %v807 = vsel %vm806, %v799, %v803
    %v808 = vand.u32 2147483647, %v797
    %vm809 = vcmp.eq.f32.partialorder %v808, 8.507059e+37
    %v810 = vand.u32 %v797, 2147483648
    %v811 = vor.u32 1.1754944e-38, %v810
    %v812 = vsel %vm809, %v811, %v807
    %v813 = vmul.f32 1.0, %v812
    %v814 = vrcp.pop %v798
    %v815 = vmul.f32 %v798, %v814
    %v816 = vsub.f32 1.0, %v815
    %v817 = vmul.f32 %v814, %v816
    %v818 = vadd.f32 %v814, %v817
    %vm819 = vweird.f32 %v798
    %vm820 = vweird.f32 %v814
    %vm821 = vmor %vm819, %vm820
    %v822 = vsel %vm821, %v814, %v818
    %v823 = vand.u32 2147483647, %v798
    %vm824 = vcmp.eq.f32.partialorder %v823, 8.507059e+37
    %v825 = vand.u32 %v798, 2147483648
    %v826 = vor.u32 1.1754944e-38, %v825
    %v827 = vsel %vm824, %v826, %v822
    %v828 = vmul.f32 1.0, %v827
    %v829 = vadd.f32 %v787, %v619
    %v830 = vmul.f32 %v813, %v829
    %v831 = vadd.f32 %v550, %v830
    %v832 = vtanh.pop %v831
    %v833 = vsub.f32 1.0, %v828
    %v834 = vmul.f32 %v833, %v832
    %v835 = vmul.f32 %v828, %v728
    %v836 = vadd.f32 %v834, %v835
    %837 = vmatpush.msra.mxu0 %v614
    %838 = vmatpush.msra.mxu0 %v611
    %839 = vmatpush.msra.mxu0 %v608
    %840 = vmatpush.msra.mxu0 %v605
    %841 = vmatpush.msra.mxu0 %v602
    %842 = vmatpush.msra.mxu0 %v599
    %843 = vmatpush.msra.mxu0 %v596
    %844 = vmatpush.msra.mxu0 %v593
    %845 = vmatpush.msra.mxu0 %v590
    %846 = vmatpush.msra.mxu0 %v587
    %847 = vmatpush.msra.mxu0 %v584
    %848 = vmatpush.msra.mxu0 %v581
    %849 = vmatpush.msra.mxu0 %v578
    %850 = vmatpush.msra.mxu0 %v575
    %851 = vmatpush.msra.mxu0 %v572
    %852 = vmatpush.msra.mxu0 %v569
    %853 = vmatmul.f32.gmra.mxu0 %v836
    %v854 = vpop.f32.mrf.mxu0
    %v855 = vadd.f32 0.0, %v854
    %856 = vdwg.mxu0
    %857 = vmatpush.msra.mxu0 %v615
    %858 = vmatpush.msra.mxu0 %v612
    %859 = vmatpush.msra.mxu0 %v609
    %860 = vmatpush.msra.mxu0 %v606
    %861 = vmatpush.msra.mxu0 %v603
    %862 = vmatpush.msra.mxu0 %v600
    %863 = vmatpush.msra.mxu0 %v597
    %864 = vmatpush.msra.mxu0 %v594
    %865 = vmatpush.msra.mxu0 %v591
    %866 = vmatpush.msra.mxu0 %v588
    %867 = vmatpush.msra.mxu0 %v585
    %868 = vmatpush.msra.mxu0 %v582
    %869 = vmatpush.msra.mxu0 %v579
    %870 = vmatpush.msra.mxu0 %v576
    %871 = vmatpush.msra.mxu0 %v573
    %872 = vmatpush.msra.mxu0 %v570
    %873 = vmatmul.f32.gmra.mxu0 %v836
    %v874 = vpop.f32.mrf.mxu0
    %v875 = vadd.f32 0.0, %v874
    %876 = vdwg.mxu0
    %877 = vmatpush.msra.mxu0 %v616
    %878 = vmatpush.msra.mxu0 %v613
    %879 = vmatpush.msra.mxu0 %v610
    %880 = vmatpush.msra.mxu0 %v607
    %881 = vmatpush.msra.mxu0 %v604
    %882 = vmatpush.msra.mxu0 %v601
    %883 = vmatpush.msra.mxu0 %v598
    %884 = vmatpush.msra.mxu0 %v595
    %885 = vmatpush.msra.mxu0 %v592
    %886 = vmatpush.msra.mxu0 %v589
    %887 = vmatpush.msra.mxu0 %v586
    %888 = vmatpush.msra.mxu0 %v583
    %889 = vmatpush.msra.mxu0 %v580
    %890 = vmatpush.msra.mxu0 %v577
    %891 = vmatpush.msra.mxu0 %v574
    %892 = vmatpush.msra.mxu0 %v571
    %893 = vmatmul.f32.gmra.mxu0 %v836
    %v894 = vpop.f32.mrf.mxu0
    %v895 = vadd.f32 0.0, %v894
    %896 = vdwg.mxu0
    %v897 = vadd.f32 %v551, %v855
    %v898 = vadd.f32 %v552, %v875
    %v899 = vxor.u32 %v897, 2147483648
    %v900 = vxor.u32 %v898, 2147483648
    %v901 = vmul.f32 %v899, 1.442695
    %v902 = vpow.pop %v901
    %v903 = vmul.f32 %v900, 1.442695
    %v904 = vpow.pop %v903
    %v905 = vadd.f32 %v902, 1.0
    %v906 = vadd.f32 %v904, 1.0
    %v907 = vrcp.pop %v905
    %v908 = vmul.f32 %v905, %v907
    %v909 = vsub.f32 1.0, %v908
    %v910 = vmul.f32 %v907, %v909
    %v911 = vadd.f32 %v907, %v910
    %vm912 = vweird.f32 %v905
    %vm913 = vweird.f32 %v907
    %vm914 = vmor %vm912, %vm913
    %v915 = vsel %vm914, %v907, %v911
    %v916 = vand.u32 2147483647, %v905
    %vm917 = vcmp.eq.f32.partialorder %v916, 8.507059e+37
    %v918 = vand.u32 %v905, 2147483648
    %v919 = vor.u32 1.1754944e-38, %v918
    %v920 = vsel %vm917, %v919, %v915
    %v921 = vmul.f32 1.0, %v920
    %v922 = vrcp.pop %v906
    %v923 = vmul.f32 %v906, %v922
    %v924 = vsub.f32 1.0, %v923
    %v925 = vmul.f32 %v922, %v924
    %v926 = vadd.f32 %v922, %v925
    %vm927 = vweird.f32 %v906
    %vm928 = vweird.f32 %v922
    %vm929 = vmor %vm927, %vm928
    %v930 = vsel %vm929, %v922, %v926
    %v931 = vand.u32 2147483647, %v906
    %vm932 = vcmp.eq.f32.partialorder %v931, 8.507059e+37
    %v933 = vand.u32 %v906, 2147483648
    %v934 = vor.u32 1.1754944e-38, %v933
    %v935 = vsel %vm932, %v934, %v930
    %v936 = vmul.f32 1.0, %v935
    %v937 = vadd.f32 %v895, %v619
    %v938 = vmul.f32 %v921, %v937
    %v939 = vadd.f32 %v553, %v938
    %v940 = vtanh.pop %v939
    %v941 = vsub.f32 1.0, %v936
    %v942 = vmul.f32 %v941, %v940
    %v943 = vmul.f32 %v936, %v836
    %v944 = vadd.f32 %v942, %v943
    %945 = vmatpush.msra.mxu0 %v614
    %946 = vmatpush.msra.mxu0 %v611
    %947 = vmatpush.msra.mxu0 %v608
    %948 = vmatpush.msra.mxu0 %v605
    %949 = vmatpush.msra.mxu0 %v602
    %950 = vmatpush.msra.mxu0 %v599
    %951 = vmatpush.msra.mxu0 %v596
    %952 = vmatpush.msra.mxu0 %v593
    %953 = vmatpush.msra.mxu0 %v590
    %954 = vmatpush.msra.mxu0 %v587
    %955 = vmatpush.msra.mxu0 %v584
    %956 = vmatpush.msra.mxu0 %v581
    %957 = vmatpush.msra.mxu0 %v578
    %958 = vmatpush.msra.mxu0 %v575
    %959 = vmatpush.msra.mxu0 %v572
    %960 = vmatpush.msra.mxu0 %v569
    %961 = vmatmul.f32.gmra.mxu0 %v944
    %v962 = vpop.f32.mrf.mxu0
    %v963 = vadd.f32 0.0, %v962
    %964 = vdwg.mxu0
    %965 = vmatpush.msra.mxu0 %v615
    %966 = vmatpush.msra.mxu0 %v612
    %967 = vmatpush.msra.mxu0 %v609
    %968 = vmatpush.msra.mxu0 %v606
    %969 = vmatpush.msra.mxu0 %v603
    %970 = vmatpush.msra.mxu0 %v600
    %971 = vmatpush.msra.mxu0 %v597
    %972 = vmatpush.msra.mxu0 %v594
    %973 = vmatpush.msra.mxu0 %v591
    %974 = vmatpush.msra.mxu0 %v588
    %975 = vmatpush.msra.mxu0 %v585
    %976 = vmatpush.msra.mxu0 %v582
    %977 = vmatpush.msra.mxu0 %v579
    %978 = vmatpush.msra.mxu0 %v576
    %979 = vmatpush.msra.mxu0 %v573
    %980 = vmatpush.msra.mxu0 %v570
    %981 = vmatmul.f32.gmra.mxu0 %v944
    %v982 = vpop.f32.mrf.mxu0
    %v983 = vadd.f32 0.0, %v982
    %984 = vdwg.mxu0
    %985 = vmatpush.msra.mxu0 %v616
    %986 = vmatpush.msra.mxu0 %v613
    %987 = vmatpush.msra.mxu0 %v610
    %988 = vmatpush.msra.mxu0 %v607
    %989 = vmatpush.msra.mxu0 %v604
    %990 = vmatpush.msra.mxu0 %v601
    %991 = vmatpush.msra.mxu0 %v598
    %992 = vmatpush.msra.mxu0 %v595
    %993 = vmatpush.msra.mxu0 %v592
    %994 = vmatpush.msra.mxu0 %v589
    %995 = vmatpush.msra.mxu0 %v586
    %996 = vmatpush.msra.mxu0 %v583
    %997 = vmatpush.msra.mxu0 %v580
    %998 = vmatpush.msra.mxu0 %v577
    %999 = vmatpush.msra.mxu0 %v574
    %1000 = vmatpush.msra.mxu0 %v571
    %1001 = vmatmul.f32.gmra.mxu0 %v944
    %v1002 = vpop.f32.mrf.mxu0
    %v1003 = vadd.f32 0.0, %v1002
    %1004 = vdwg.mxu0
    %v1005 = vadd.f32 %v554, %v963
    %v1006 = vadd.f32 %v555, %v983
    %v1007 = vxor.u32 %v1005, 2147483648
    %v1008 = vxor.u32 %v1006, 2147483648
    %v1009 = vmul.f32 %v1007, 1.442695
    %v1010 = vpow.pop %v1009
    %v1011 = vmul.f32 %v1008, 1.442695
    %v1012 = vpow.pop %v1011
    %v1013 = vadd.f32 %v1010, 1.0
    %v1014 = vadd.f32 %v1012, 1.0
    %v1015 = vrcp.pop %v1013
    %v1016 = vmul.f32 %v1013, %v1015
    %v1017 = vsub.f32 1.0, %v1016
    %v1018 = vmul.f32 %v1015, %v1017
    %v1019 = vadd.f32 %v1015, %v1018
    %vm1020 = vweird.f32 %v1013
    %vm1021 = vweird.f32 %v1015
    %vm1022 = vmor %vm1020, %vm1021
    %v1023 = vsel %vm1022, %v1015, %v1019
    %v1024 = vand.u32 2147483647, %v1013
    %vm1025 = vcmp.eq.f32.partialorder %v1024, 8.507059e+37
    %v1026 = vand.u32 %v1013, 2147483648
    %v1027 = vor.u32 1.1754944e-38, %v1026
    %v1028 = vsel %vm1025, %v1027, %v1023
    %v1029 = vmul.f32 1.0, %v1028
    %v1030 = vrcp.pop %v1014
    %v1031 = vmul.f32 %v1014, %v1030
    %v1032 = vsub.f32 1.0, %v1031
    %v1033 = vmul.f32 %v1030, %v1032
    %v1034 = vadd.f32 %v1030, %v1033
    %vm1035 = vweird.f32 %v1014
    %vm1036 = vweird.f32 %v1030
    %vm1037 = vmor %vm1035, %vm1036
    %v1038 = vsel %vm1037, %v1030, %v1034
    %v1039 = vand.u32 2147483647, %v1014
    %vm1040 = vcmp.eq.f32.partialorder %v1039, 8.507059e+37
    %v1041 = vand.u32 %v1014, 2147483648
    %v1042 = vor.u32 1.1754944e-38, %v1041
    %v1043 = vsel %vm1040, %v1042, %v1038
    %v1044 = vmul.f32 1.0, %v1043
    %v1045 = vadd.f32 %v1003, %v619
    %v1046 = vmul.f32 %v1029, %v1045
    %v1047 = vadd.f32 %v556, %v1046
    %v1048 = vtanh.pop %v1047
    %v1049 = vsub.f32 1.0, %v1044
    %v1050 = vmul.f32 %v1049, %v1048
    %v1051 = vmul.f32 %v1044, %v944
    %v1052 = vadd.f32 %v1050, %v1051
    %1053 = vmatpush.msra.mxu0 %v614
    %1054 = vmatpush.msra.mxu0 %v611
    %1055 = vmatpush.msra.mxu0 %v608
    %1056 = vmatpush.msra.mxu0 %v605
    %1057 = vmatpush.msra.mxu0 %v602
    %1058 = vmatpush.msra.mxu0 %v599
    %1059 = vmatpush.msra.mxu0 %v596
    %1060 = vmatpush.msra.mxu0 %v593
    %1061 = vmatpush.msra.mxu0 %v590
    %1062 = vmatpush.msra.mxu0 %v587
    %1063 = vmatpush.msra.mxu0 %v584
    %1064 = vmatpush.msra.mxu0 %v581
    %1065 = vmatpush.msra.mxu0 %v578
    %1066 = vmatpush.msra.mxu0 %v575
    %1067 = vmatpush.msra.mxu0 %v572
    %1068 = vmatpush.msra.mxu0 %v569
    %1069 = vmatmul.f32.gmra.mxu0 %v1052
    %v1070 = vpop.f32.mrf.mxu0
    %v1071 = vadd.f32 0.0, %v1070
    %1072 = vdwg.mxu0
    %1073 = vmatpush.msra.mxu0 %v615
    %1074 = vmatpush.msra.mxu0 %v612
    %1075 = vmatpush.msra.mxu0 %v609
    %1076 = vmatpush.msra.mxu0 %v606
    %1077 = vmatpush.msra.mxu0 %v603
    %1078 = vmatpush.msra.mxu0 %v600
    %1079 = vmatpush.msra.mxu0 %v597
    %1080 = vmatpush.msra.mxu0 %v594
    %1081 = vmatpush.msra.mxu0 %v591
    %1082 = vmatpush.msra.mxu0 %v588
    %1083 = vmatpush.msra.mxu0 %v585
    %1084 = vmatpush.msra.mxu0 %v582
    %1085 = vmatpush.msra.mxu0 %v579
    %1086 = vmatpush.msra.mxu0 %v576
    %1087 = vmatpush.msra.mxu0 %v573
    %1088 = vmatpush.msra.mxu0 %v570
    %1089 = vmatmul.f32.gmra.mxu0 %v1052
    %v1090 = vpop.f32.mrf.mxu0
    %v1091 = vadd.f32 0.0, %v1090
    %1092 = vdwg.mxu0
    %1093 = vmatpush.msra.mxu0 %v616
    %1094 = vmatpush.msra.mxu0 %v613
    %1095 = vmatpush.msra.mxu0 %v610
    %1096 = vmatpush.msra.mxu0 %v607
    %1097 = vmatpush.msra.mxu0 %v604
    %1098 = vmatpush.msra.mxu0 %v601
    %1099 = vmatpush.msra.mxu0 %v598
    %1100 = vmatpush.msra.mxu0 %v595
    %1101 = vmatpush.msra.mxu0 %v592
    %1102 = vmatpush.msra.mxu0 %v589
    %1103 = vmatpush.msra.mxu0 %v586
    %1104 = vmatpush.msra.mxu0 %v583
    %1105 = vmatpush.msra.mxu0 %v580
    %1106 = vmatpush.msra.mxu0 %v577
    %1107 = vmatpush.msra.mxu0 %v574
    %1108 = vmatpush.msra.mxu0 %v571
    %1109 = vmatmul.f32.gmra.mxu0 %v1052
    %v1110 = vpop.f32.mrf.mxu0
    %v1111 = vadd.f32 0.0, %v1110
    %1112 = vdwg.mxu0
    %v1113 = vadd.f32 %v557, %v1071
    %v1114 = vadd.f32 %v558, %v1091
    %v1115 = vxor.u32 %v1113, 2147483648
    %v1116 = vxor.u32 %v1114, 2147483648
    %v1117 = vmul.f32 %v1115, 1.442695
    %v1118 = vpow.pop %v1117
    %v1119 = vmul.f32 %v1116, 1.442695
    %v1120 = vpow.pop %v1119
    %v1121 = vadd.f32 %v1118, 1.0
    %v1122 = vadd.f32 %v1120, 1.0
    %v1123 = vrcp.pop %v1121
    %v1124 = vmul.f32 %v1121, %v1123
    %v1125 = vsub.f32 1.0, %v1124
    %v1126 = vmul.f32 %v1123, %v1125
    %v1127 = vadd.f32 %v1123, %v1126
    %vm1128 = vweird.f32 %v1121
    %vm1129 = vweird.f32 %v1123
    %vm1130 = vmor %vm1128, %vm1129
    %v1131 = vsel %vm1130, %v1123, %v1127
    %v1132 = vand.u32 2147483647, %v1121
    %vm1133 = vcmp.eq.f32.partialorder %v1132, 8.507059e+37
    %v1134 = vand.u32 %v1121, 2147483648
    %v1135 = vor.u32 1.1754944e-38, %v1134
    %v1136 = vsel %vm1133, %v1135, %v1131
    %v1137 = vmul.f32 1.0, %v1136
    %v1138 = vrcp.pop %v1122
    %v1139 = vmul.f32 %v1122, %v1138
    %v1140 = vsub.f32 1.0, %v1139
    %v1141 = vmul.f32 %v1138, %v1140
    %v1142 = vadd.f32 %v1138, %v1141
    %vm1143 = vweird.f32 %v1122
    %vm1144 = vweird.f32 %v1138
    %vm1145 = vmor %vm1143, %vm1144
    %v1146 = vsel %vm1145, %v1138, %v1142
    %v1147 = vand.u32 2147483647, %v1122
    %vm1148 = vcmp.eq.f32.partialorder %v1147, 8.507059e+37
    %v1149 = vand.u32 %v1122, 2147483648
    %v1150 = vor.u32 1.1754944e-38, %v1149
    %v1151 = vsel %vm1148, %v1150, %v1146
    %v1152 = vmul.f32 1.0, %v1151
    %v1153 = vadd.f32 %v1111, %v619
    %v1154 = vmul.f32 %v1137, %v1153
    %v1155 = vadd.f32 %v559, %v1154
    %v1156 = vtanh.pop %v1155
    %v1157 = vsub.f32 1.0, %v1152
    %v1158 = vmul.f32 %v1157, %v1156
    %v1159 = vmul.f32 %v1152, %v1052
    %v1160 = vadd.f32 %v1158, %v1159
    %1161 = vmatpush.msra.mxu0 %v614
    %1162 = vmatpush.msra.mxu0 %v611
    %1163 = vmatpush.msra.mxu0 %v608
    %1164 = vmatpush.msra.mxu0 %v605
    %1165 = vmatpush.msra.mxu0 %v602
    %1166 = vmatpush.msra.mxu0 %v599
    %1167 = vmatpush.msra.mxu0 %v596
    %1168 = vmatpush.msra.mxu0 %v593
    %1169 = vmatpush.msra.mxu0 %v590
    %1170 = vmatpush.msra.mxu0 %v587
    %1171 = vmatpush.msra.mxu0 %v584
    %1172 = vmatpush.msra.mxu0 %v581
    %1173 = vmatpush.msra.mxu0 %v578
    %1174 = vmatpush.msra.mxu0 %v575
    %1175 = vmatpush.msra.mxu0 %v572
    %1176 = vmatpush.msra.mxu0 %v569
    %1177 = vmatmul.f32.gmra.mxu0 %v1160
    %v1178 = vpop.f32.mrf.mxu0
    %v1179 = vadd.f32 0.0, %v1178
    %1180 = vdwg.mxu0
    %1181 = vmatpush.msra.mxu0 %v615
    %1182 = vmatpush.msra.mxu0 %v612
    %1183 = vmatpush.msra.mxu0 %v609
    %1184 = vmatpush.msra.mxu0 %v606
    %1185 = vmatpush.msra.mxu0 %v603
    %1186 = vmatpush.msra.mxu0 %v600
    %1187 = vmatpush.msra.mxu0 %v597
    %1188 = vmatpush.msra.mxu0 %v594
    %1189 = vmatpush.msra.mxu0 %v591
    %1190 = vmatpush.msra.mxu0 %v588
    %1191 = vmatpush.msra.mxu0 %v585
    %1192 = vmatpush.msra.mxu0 %v582
    %1193 = vmatpush.msra.mxu0 %v579
    %1194 = vmatpush.msra.mxu0 %v576
    %1195 = vmatpush.msra.mxu0 %v573
    %1196 = vmatpush.msra.mxu0 %v570
    %1197 = vmatmul.f32.gmra.mxu0 %v1160
    %v1198 = vpop.f32.mrf.mxu0
    %v1199 = vadd.f32 0.0, %v1198
    %1200 = vdwg.mxu0
    %1201 = vmatpush.msra.mxu0 %v616
    %1202 = vmatpush.msra.mxu0 %v613
    %1203 = vmatpush.msra.mxu0 %v610
    %1204 = vmatpush.msra.mxu0 %v607
    %1205 = vmatpush.msra.mxu0 %v604
    %1206 = vmatpush.msra.mxu0 %v601
    %1207 = vmatpush.msra.mxu0 %v598
    %1208 = vmatpush.msra.mxu0 %v595
    %1209 = vmatpush.msra.mxu0 %v592
    %1210 = vmatpush.msra.mxu0 %v589
    %1211 = vmatpush.msra.mxu0 %v586
    %1212 = vmatpush.msra.mxu0 %v583
    %1213 = vmatpush.msra.mxu0 %v580
    %1214 = vmatpush.msra.mxu0 %v577
    %1215 = vmatpush.msra.mxu0 %v574
    %1216 = vmatpush.msra.mxu0 %v571
    %1217 = vmatmul.f32.gmra.mxu0 %v1160
    %v1218 = vpop.f32.mrf.mxu0
    %v1219 = vadd.f32 0.0, %v1218
    %1220 = vdwg.mxu0
    %v1221 = vadd.f32 %v560, %v1179
    %v1222 = vadd.f32 %v561, %v1199
    %v1223 = vxor.u32 %v1221, 2147483648
    %v1224 = vxor.u32 %v1222, 2147483648
    %v1225 = vmul.f32 %v1223, 1.442695
    %v1226 = vpow.pop %v1225
    %v1227 = vmul.f32 %v1224, 1.442695
    %v1228 = vpow.pop %v1227
    %v1229 = vadd.f32 %v1226, 1.0
    %v1230 = vadd.f32 %v1228, 1.0
    %v1231 = vrcp.pop %v1229
    %v1232 = vmul.f32 %v1229, %v1231
    %v1233 = vsub.f32 1.0, %v1232
    %v1234 = vmul.f32 %v1231, %v1233
    %v1235 = vadd.f32 %v1231, %v1234
    %vm1236 = vweird.f32 %v1229
    %vm1237 = vweird.f32 %v1231
    %vm1238 = vmor %vm1236, %vm1237
    %v1239 = vsel %vm1238, %v1231, %v1235
    %v1240 = vand.u32 2147483647, %v1229
    %vm1241 = vcmp.eq.f32.partialorder %v1240, 8.507059e+37
    %v1242 = vand.u32 %v1229, 2147483648
    %v1243 = vor.u32 1.1754944e-38, %v1242
    %v1244 = vsel %vm1241, %v1243, %v1239
    %v1245 = vmul.f32 1.0, %v1244
    %v1246 = vrcp.pop %v1230
    %v1247 = vmul.f32 %v1230, %v1246
    %v1248 = vsub.f32 1.0, %v1247
    %v1249 = vmul.f32 %v1246, %v1248
    %v1250 = vadd.f32 %v1246, %v1249
    %vm1251 = vweird.f32 %v1230
    %vm1252 = vweird.f32 %v1246
    %vm1253 = vmor %vm1251, %vm1252
    %v1254 = vsel %vm1253, %v1246, %v1250
    %v1255 = vand.u32 2147483647, %v1230
    %vm1256 = vcmp.eq.f32.partialorder %v1255, 8.507059e+37
    %v1257 = vand.u32 %v1230, 2147483648
    %v1258 = vor.u32 1.1754944e-38, %v1257
    %v1259 = vsel %vm1256, %v1258, %v1254
    %v1260 = vmul.f32 1.0, %v1259
    %v1261 = vadd.f32 %v1219, %v619
    %v1262 = vmul.f32 %v1245, %v1261
    %v1263 = vadd.f32 %v562, %v1262
    %v1264 = vtanh.pop %v1263
    %v1265 = vsub.f32 1.0, %v1260
    %v1266 = vmul.f32 %v1265, %v1264
    %v1267 = vmul.f32 %v1260, %v1160
    %v1268 = vadd.f32 %v1266, %v1267
    %1269 = vmatpush.msra.mxu0 %v614
    %1270 = vmatpush.msra.mxu0 %v611
    %1271 = vmatpush.msra.mxu0 %v608
    %1272 = vmatpush.msra.mxu0 %v605
    %1273 = vmatpush.msra.mxu0 %v602
    %1274 = vmatpush.msra.mxu0 %v599
    %1275 = vmatpush.msra.mxu0 %v596
    %1276 = vmatpush.msra.mxu0 %v593
    %1277 = vmatpush.msra.mxu0 %v590
    %1278 = vmatpush.msra.mxu0 %v587
    %1279 = vmatpush.msra.mxu0 %v584
    %1280 = vmatpush.msra.mxu0 %v581
    %1281 = vmatpush.msra.mxu0 %v578
    %1282 = vmatpush.msra.mxu0 %v575
    %1283 = vmatpush.msra.mxu0 %v572
    %1284 = vmatpush.msra.mxu0 %v569
    %1285 = vmatmul.f32.gmra.mxu0 %v1268
    %v1286 = vpop.f32.mrf.mxu0
    %v1287 = vadd.f32 0.0, %v1286
    %1288 = vdwg.mxu0
    %1289 = vmatpush.msra.mxu0 %v615
    %1290 = vmatpush.msra.mxu0 %v612
    %1291 = vmatpush.msra.mxu0 %v609
    %1292 = vmatpush.msra.mxu0 %v606
    %1293 = vmatpush.msra.mxu0 %v603
    %1294 = vmatpush.msra.mxu0 %v600
    %1295 = vmatpush.msra.mxu0 %v597
    %1296 = vmatpush.msra.mxu0 %v594
    %1297 = vmatpush.msra.mxu0 %v591
    %1298 = vmatpush.msra.mxu0 %v588
    %1299 = vmatpush.msra.mxu0 %v585
    %1300 = vmatpush.msra.mxu0 %v582
    %1301 = vmatpush.msra.mxu0 %v579
    %1302 = vmatpush.msra.mxu0 %v576
    %1303 = vmatpush.msra.mxu0 %v573
    %1304 = vmatpush.msra.mxu0 %v570
    %1305 = vmatmul.f32.gmra.mxu0 %v1268
    %v1306 = vpop.f32.mrf.mxu0
    %v1307 = vadd.f32 0.0, %v1306
    %1308 = vdwg.mxu0
    %1309 = vmatpush.msra.mxu0 %v616
    %1310 = vmatpush.msra.mxu0 %v613
    %1311 = vmatpush.msra.mxu0 %v610
    %1312 = vmatpush.msra.mxu0 %v607
    %1313 = vmatpush.msra.mxu0 %v604
    %1314 = vmatpush.msra.mxu0 %v601
    %1315 = vmatpush.msra.mxu0 %v598
    %1316 = vmatpush.msra.mxu0 %v595
    %1317 = vmatpush.msra.mxu0 %v592
    %1318 = vmatpush.msra.mxu0 %v589
    %1319 = vmatpush.msra.mxu0 %v586
    %1320 = vmatpush.msra.mxu0 %v583
    %1321 = vmatpush.msra.mxu0 %v580
    %1322 = vmatpush.msra.mxu0 %v577
    %1323 = vmatpush.msra.mxu0 %v574
    %1324 = vmatpush.msra.mxu0 %v571
    %1325 = vmatmul.f32.gmra.mxu0 %v1268
    %v1326 = vpop.f32.mrf.mxu0
    %v1327 = vadd.f32 0.0, %v1326
    %1328 = vdwg.mxu0
    %v1329 = vadd.f32 %v563, %v1287
    %v1330 = vadd.f32 %v564, %v1307
    %v1331 = vxor.u32 %v1329, 2147483648
    %v1332 = vxor.u32 %v1330, 2147483648
    %v1333 = vmul.f32 %v1331, 1.442695
    %v1334 = vpow.pop %v1333
    %v1335 = vmul.f32 %v1332, 1.442695
    %v1336 = vpow.pop %v1335
    %v1337 = vadd.f32 %v1334, 1.0
    %v1338 = vadd.f32 %v1336, 1.0
    %v1339 = vrcp.pop %v1337
    %v1340 = vmul.f32 %v1337, %v1339
    %v1341 = vsub.f32 1.0, %v1340
    %v1342 = vmul.f32 %v1339, %v1341
    %v1343 = vadd.f32 %v1339, %v1342
    %vm1344 = vweird.f32 %v1337
    %vm1345 = vweird.f32 %v1339
    %vm1346 = vmor %vm1344, %vm1345
    %v1347 = vsel %vm1346, %v1339, %v1343
    %v1348 = vand.u32 2147483647, %v1337
    %vm1349 = vcmp.eq.f32.partialorder %v1348, 8.507059e+37
    %v1350 = vand.u32 %v1337, 2147483648
    %v1351 = vor.u32 1.1754944e-38, %v1350
    %v1352 = vsel %vm1349, %v1351, %v1347
    %v1353 = vmul.f32 1.0, %v1352
    %v1354 = vrcp.pop %v1338
    %v1355 = vmul.f32 %v1338, %v1354
    %v1356 = vsub.f32 1.0, %v1355
    %v1357 = vmul.f32 %v1354, %v1356
    %v1358 = vadd.f32 %v1354, %v1357
    %vm1359 = vweird.f32 %v1338
    %vm1360 = vweird.f32 %v1354
    %vm1361 = vmor %vm1359, %vm1360
    %v1362 = vsel %vm1361, %v1354, %v1358
    %v1363 = vand.u32 2147483647, %v1338
    %vm1364 = vcmp.eq.f32.partialorder %v1363, 8.507059e+37
    %v1365 = vand.u32 %v1338, 2147483648
    %v1366 = vor.u32 1.1754944e-38, %v1365
    %v1367 = vsel %vm1364, %v1366, %v1362
    %v1368 = vmul.f32 1.0, %v1367
    %v1369 = vadd.f32 %v1327, %v619
    %v1370 = vmul.f32 %v1353, %v1369
    %v1371 = vadd.f32 %v565, %v1370
    %v1372 = vtanh.pop %v1371
    %v1373 = vsub.f32 1.0, %v1368
    %v1374 = vmul.f32 %v1373, %v1372
    %v1375 = vmul.f32 %v1368, %v1268
    %v1376 = vadd.f32 %v1374, %v1375
    %1377 = vmatpush.msra.mxu0 %v614
    %1378 = vmatpush.msra.mxu0 %v611
    %1379 = vmatpush.msra.mxu0 %v608
    %1380 = vmatpush.msra.mxu0 %v605
    %1381 = vmatpush.msra.mxu0 %v602
    %1382 = vmatpush.msra.mxu0 %v599
    %1383 = vmatpush.msra.mxu0 %v596
    %1384 = vmatpush.msra.mxu0 %v593
    %1385 = vmatpush.msra.mxu0 %v590
    %1386 = vmatpush.msra.mxu0 %v587
    %1387 = vmatpush.msra.mxu0 %v584
    %1388 = vmatpush.msra.mxu0 %v581
    %1389 = vmatpush.msra.mxu0 %v578
    %1390 = vmatpush.msra.mxu0 %v575
    %1391 = vmatpush.msra.mxu0 %v572
    %1392 = vmatpush.msra.mxu0 %v569
    %1393 = vmatmul.f32.gmra.mxu0 %v1376
    %v1394 = vpop.f32.mrf.mxu0
    %v1395 = vadd.f32 0.0, %v1394
    %1396 = vdwg.mxu0
    %1397 = vmatpush.msra.mxu0 %v615
    %1398 = vmatpush.msra.mxu0 %v612
    %1399 = vmatpush.msra.mxu0 %v609
    %1400 = vmatpush.msra.mxu0 %v606
    %1401 = vmatpush.msra.mxu0 %v603
    %1402 = vmatpush.msra.mxu0 %v600
    %1403 = vmatpush.msra.mxu0 %v597
    %1404 = vmatpush.msra.mxu0 %v594
    %1405 = vmatpush.msra.mxu0 %v591
    %1406 = vmatpush.msra.mxu0 %v588
    %1407 = vmatpush.msra.mxu0 %v585
    %1408 = vmatpush.msra.mxu0 %v582
    %1409 = vmatpush.msra.mxu0 %v579
    %1410 = vmatpush.msra.mxu0 %v576
    %1411 = vmatpush.msra.mxu0 %v573
    %1412 = vmatpush.msra.mxu0 %v570
    %1413 = vmatmul.f32.gmra.mxu0 %v1376
    %v1414 = vpop.f32.mrf.mxu0
    %v1415 = vadd.f32 0.0, %v1414
    %1416 = vdwg.mxu0
    %1417 = vmatpush.msra.mxu0 %v616
    %1418 = vmatpush.msra.mxu0 %v613
    %1419 = vmatpush.msra.mxu0 %v610
    %1420 = vmatpush.msra.mxu0 %v607
    %1421 = vmatpush.msra.mxu0 %v604
    %1422 = vmatpush.msra.mxu0 %v601
    %1423 = vmatpush.msra.mxu0 %v598
    %1424 = vmatpush.msra.mxu0 %v595
    %1425 = vmatpush.msra.mxu0 %v592
    %1426 = vmatpush.msra.mxu0 %v589
    %1427 = vmatpush.msra.mxu0 %v586
    %1428 = vmatpush.msra.mxu0 %v583
    %1429 = vmatpush.msra.mxu0 %v580
    %1430 = vmatpush.msra.mxu0 %v577
    %1431 = vmatpush.msra.mxu0 %v574
    %1432 = vmatpush.msra.mxu0 %v571
    %1433 = vmatmul.f32.gmra.mxu0 %v1376
    %v1434 = vpop.f32.mrf.mxu0
    %v1435 = vadd.f32 0.0, %v1434
    %1436 = vdwg.mxu0
    %v1437 = vadd.f32 %v566, %v1395
    %v1438 = vadd.f32 %v567, %v1415
    %v1439 = vxor.u32 %v1437, 2147483648
    %v1440 = vxor.u32 %v1438, 2147483648
    %v1441 = vmul.f32 %v1439, 1.442695
    %v1442 = vpow.pop %v1441
    %v1443 = vmul.f32 %v1440, 1.442695
    %v1444 = vpow.pop %v1443
    %v1445 = vadd.f32 %v1442, 1.0
    %v1446 = vadd.f32 %v1444, 1.0
    %v1447 = vrcp.pop %v1445
    %v1448 = vmul.f32 %v1445, %v1447
    %v1449 = vsub.f32 1.0, %v1448
    %v1450 = vmul.f32 %v1447, %v1449
    %v1451 = vadd.f32 %v1447, %v1450
    %vm1452 = vweird.f32 %v1445
    %vm1453 = vweird.f32 %v1447
    %vm1454 = vmor %vm1452, %vm1453
    %v1455 = vsel %vm1454, %v1447, %v1451
    %v1456 = vand.u32 2147483647, %v1445
    %vm1457 = vcmp.eq.f32.partialorder %v1456, 8.507059e+37
    %v1458 = vand.u32 %v1445, 2147483648
    %v1459 = vor.u32 1.1754944e-38, %v1458
    %v1460 = vsel %vm1457, %v1459, %v1455
    %v1461 = vmul.f32 1.0, %v1460
    %v1462 = vrcp.pop %v1446
    %v1463 = vmul.f32 %v1446, %v1462
    %v1464 = vsub.f32 1.0, %v1463
    %v1465 = vmul.f32 %v1462, %v1464
    %v1466 = vadd.f32 %v1462, %v1465
    %vm1467 = vweird.f32 %v1446
    %vm1468 = vweird.f32 %v1462
    %vm1469 = vmor %vm1467, %vm1468
    %v1470 = vsel %vm1469, %v1462, %v1466
    %v1471 = vand.u32 2147483647, %v1446
    %vm1472 = vcmp.eq.f32.partialorder %v1471, 8.507059e+37
    %v1473 = vand.u32 %v1446, 2147483648
    %v1474 = vor.u32 1.1754944e-38, %v1473
    %v1475 = vsel %vm1472, %v1474, %v1470
    %v1476 = vmul.f32 1.0, %v1475
    %v1477 = vadd.f32 %v1435, %v619
    %v1478 = vmul.f32 %v1461, %v1477
    %v1479 = vadd.f32 %v568, %v1478
    %v1480 = vtanh.pop %v1479
    %v1481 = vsub.f32 1.0, %v1476
    %v1482 = vmul.f32 %v1481, %v1480
    %v1483 = vmul.f32 %v1476, %v1376
    %v1484 = vadd.f32 %v1482, %v1483
    %vm1485 = vcmp.lt.s32.totalorder %v82, 64
    %v1486 = vsel %vm1485, %v728, %v1484
    %v1487 = vsel %vm1485, %v836, %v1376
    %v1488 = vsel %vm1485, %v944, %v1268
    %v1489 = vsel %vm1485, %v1052, %v1160
    %v1490 = vsel %vm1485, %v1160, %v1052
    %v1491 = vsel %vm1485, %v1268, %v944
    %v1492 = vsel %vm1485, %v1376, %v836
    %v1493 = vsel %vm1485, %v1484, %v728
    %1494 = vst [vmem:[%s9] sm:$0xff] %v1486
    %1495 = vst [vmem:[%s9 + $0x8] sm:$0xff] %v1487
    %1496 = vst [vmem:[%s9 + $0x10] sm:$0xff] %v1488
    %1497 = vst [vmem:[%s9 + $0x18] sm:$0xff] %v1489
    %1498 = vst [vmem:[%s9 + $0x20] sm:$0xff] %v1490
    %1499 = vst [vmem:[%s9 + $0x28] sm:$0xff] %v1491
    %1500 = vst [vmem:[%s9 + $0x30] sm:$0xff] %v1492
    %1501 = vst [vmem:[%s9 + $0x38] sm:$0xff] %v1493
    %v1502 = vld [vmem:[%s7] sm:$0xff]
    %v1503 = vld [vmem:[%s7 + $0x8] sm:$0xff]
    %v1504 = vld [vmem:[%s7 + $0x10] sm:$0xff]
    %v1505 = vld [vmem:[%s7 + $0x18] sm:$0xff]
    %v1506 = vld [vmem:[%s7 + $0x20] sm:$0xff]
    %v1507 = vld [vmem:[%s7 + $0x28] sm:$0xff]
    %v1508 = vld [vmem:[%s7 + $0x30] sm:$0xff]
    %v1509 = vld [vmem:[%s7 + $0x38] sm:$0xff]
    %v1510 = vld [vmem:[%s7 + $0x40] sm:$0xff]
    %v1511 = vld [vmem:[%s7 + $0x48] sm:$0xff]
    %v1512 = vld [vmem:[%s7 + $0x50] sm:$0xff]
    %v1513 = vld [vmem:[%s7 + $0x58] sm:$0xff]
    %v1514 = vld [vmem:[%s7 + $0x60] sm:$0xff]
    %v1515 = vld [vmem:[%s7 + $0x68] sm:$0xff]
    %v1516 = vld [vmem:[%s7 + $0x70] sm:$0xff]
    %v1517 = vld [vmem:[%s7 + $0x78] sm:$0xff]
    %v1518 = vld [vmem:[%s8] sm:$0x1]
    %v1520 = vperm.slane %v1518, 0
    %1522 = vmatpush.msra.mxu0 %v1517
    %1523 = vmatpush.msra.mxu0 %v1516
    %1524 = vmatpush.msra.mxu0 %v1515
    %1525 = vmatpush.msra.mxu0 %v1514
    %1526 = vmatpush.msra.mxu0 %v1513
    %1527 = vmatpush.msra.mxu0 %v1512
    %1528 = vmatpush.msra.mxu0 %v1511
    %1529 = vmatpush.msra.mxu0 %v1510
    %1530 = vmatpush.msra.mxu0 %v1509
    %1531 = vmatpush.msra.mxu0 %v1508
    %1532 = vmatpush.msra.mxu0 %v1507
    %1533 = vmatpush.msra.mxu0 %v1506
    %1534 = vmatpush.msra.mxu0 %v1505
    %1535 = vmatpush.msra.mxu0 %v1504
    %1536 = vmatpush.msra.mxu0 %v1503
    %1537 = vmatpush.msra.mxu0 %v1502
    %1538 = vmatmul.f32.gmra.mxu0 %v1484
    %v1539 = vpop.f32.mrf.mxu0
    %v1540 = vadd.f32 %v1520, %v1539
    %1541 = vdwg.mxu0
    %v1542 = vtanh.pop %v1540
    %1543 = vst [vmem:[%s10] sm:$0xff] %v1542
    // Predicated region
    $region50: #{encoder_forward.1} parent=1 // pred_check
      _
    $region51: #{encoder_forward.1} parent=1 // pred_check_branch
      %1545 = sbr.rel (0) target = $region53
    $region52: #{encoder_forward.1} parent=1 // pred_region
      _
    $region53: #{encoder_forward.1} parent=1 // pred_fallthru
      _
    // Predicated region
    $region54: #{encoder_forward.1} parent=1 // pred_check
      _
    $region55: #{encoder_forward.1} parent=1 // pred_check_branch
      %1547 = sbr.rel (0) target = $region57
    $region56: #{encoder_forward.1} parent=1 // pred_region
      _
    $region57: #{encoder_forward.1} parent=1 // pred_fallthru
      _
    // Predicated region
    $region58: #{encoder_forward.1} parent=1 // pred_check
      _
    $region59: #{encoder_forward.1} parent=1 // pred_check_branch
      %1549 = sbr.rel (0) target = $region61
    $region60: #{encoder_forward.1} parent=1 // pred_region
      _
    $region61: #{encoder_forward.1} parent=1 // pred_fallthru
      _
    // Predicated region
    $region62: #{encoder_forward.1} parent=1 // pred_check
      _
    $region63: #{encoder_forward.1} parent=1 // pred_check_branch
      %1551 = sbr.rel (0) target = $region65
    $region64: #{encoder_forward.1} parent=1 // pred_region
      _
    $region65: #{encoder_forward.1} parent=1 // pred_fallthru
      _
    %1552 = vsyncpa [#allocation3], 1
    %1553 = vsyncpa [#allocation5], 1

</llo_original>
